<compile_context>
chip_gen: v6e
topology: v6e:2x2x1
jax: 0.10.0
libtpu: 0.0.40
codegen_flags: <defaults>
</compile_context>

<pallas_src>
import functools

import jax
import jax.numpy as jnp
from jax.experimental import pallas as pl
from jax.experimental.pallas import tpu as pltpu


def _round_up(x, m):
    return (x + m - 1) // m * m


def aves_kernel(frames_ref, w_fe_ref, b_fe_ref, w_head_ref, b_head_ref,
                mean_ref, logits_ref, *, n_frames, tile_frames):
    """Grid = (batch, frame_tiles).  Per grid step:

      frames_ref : (TM, Wp)  bf16  zero-padded audio frames for this tile
      w_fe_ref   : (Wp, D)   bf16  surrogate feature-extractor weight (resident)
      b_fe_ref   : (1, D)    f32
      w_head_ref : (D, Cp)   f32   classifier_head.weight.T (lane-padded)
      b_head_ref : (1, Cp)   f32
      mean_ref   : (1, D)    f32   per-batch output block, accumulated over f
      logits_ref : (1, Cp)   f32   per-batch output block, written at last f
    """
    f = pl.program_id(1)
    nf = pl.num_programs(1)

    @pl.when(f == 0)
    def _init():
        mean_ref[...] = jnp.zeros_like(mean_ref)

    # Feature extraction: strided conv == framed matmul (MXU, bf16 in, f32 acc).
    emb = jnp.dot(frames_ref[...], w_fe_ref[...],
                  preferred_element_type=jnp.float32) + b_fe_ref[...]
    # TODO(synk): torch nn.GELU is exact erf-GELU; tanh approximation used here
    # (the in-script reference uses the same approximation).
    emb = jax.nn.gelu(emb)                                      # (TM, D) f32

    if n_frames % tile_frames != 0:
        # Mask rows that are zero-padding past the true frame count.
        row = (f * tile_frames
               + jax.lax.broadcasted_iota(jnp.int32, (tile_frames, 1), 0))
        emb = jnp.where(row < n_frames, emb, 0.0)

    # Mean over time = running sum into the resident (1, D) output block.
    mean_ref[...] += jnp.sum(emb, axis=0, keepdims=True)

    @pl.when(f == nf - 1)
    def _finalize():
        mean = mean_ref[...] * jnp.float32(1.0 / n_frames)
        mean_ref[...] = mean
        # Dropout(p=0.2) is identity in eval mode (set_eval_aves).
        logits_ref[...] = jnp.dot(mean, w_head_ref[...],
                                  preferred_element_type=jnp.float32) + b_head_ref[...]


@functools.partial(jax.jit, static_argnames=("frame_len", "tile_frames"))
def aves_classifier_forward(sig, w_fe, b_fe, w_head, b_head, *,
                            frame_len, tile_frames=512):
    """sig: (B, T) float32 -> (mean_embedding (B, D), logits (B, C))."""
    B, T = sig.shape
    W = frame_len
    F = T // W
    D = w_fe.shape[1]
    C = w_head.shape[1]

    # Tile / padding choices: TM multiple of 8 (and of 256 at realistic sizes),
    # contraction dim padded to a lane multiple, logits lane-padded to 128.
    TM = min(tile_frames, _round_up(F, 8))
    F_pad = _round_up(F, TM)
    W_pad = _round_up(W, 128)
    C_pad = _round_up(C, 128)
    n_f_tiles = F_pad // TM

    # Glue: frame the waveform (non-overlapping hop == kernel size), zero-pad,
    # and cast the MXU operands to bf16 (accumulation stays f32 in-kernel).
    frames = sig[:, : F * W].reshape(B, F, W).astype(jnp.float32)
    frames = jnp.pad(frames, ((0, 0), (0, F_pad - F), (0, W_pad - W)))
    frames = frames.astype(jnp.bfloat16)

    w_fe_p = jnp.pad(w_fe.astype(jnp.float32),
                     ((0, W_pad - W), (0, 0))).astype(jnp.bfloat16)
    b_fe_p = b_fe.astype(jnp.float32).reshape(1, D)
    w_head_p = jnp.pad(w_head.astype(jnp.float32), ((0, 0), (0, C_pad - C)))
    b_head_p = jnp.pad(b_head.astype(jnp.float32).reshape(1, C),
                       ((0, 0), (0, C_pad - C)))

    # VMEM budget sized from actual buffers (frames double-buffered, weights
    # resident, f32 emb intermediate) with 3x headroom, capped for v7x (64 MiB).
    vmem_need = (2 * TM * W_pad * 2                    # frame tiles, 2 buffers, bf16
                 + W_pad * D * 2                       # w_fe (bf16, resident)
                 + (D + D * C_pad + C_pad) * 4         # b_fe, w_head, b_head
                 + 2 * (D + C_pad) * 4                 # output blocks
                 + TM * D * 4)                         # emb intermediate
    vmem_limit = int(max(16 << 20, min(3 * vmem_need, 48 << 20)))

    kernel = functools.partial(aves_kernel, n_frames=F, tile_frames=TM)

    mean3, logits3 = pl.pallas_call(
        kernel,
        out_shape=(jax.ShapeDtypeStruct((B, 1, D), jnp.float32),
                   jax.ShapeDtypeStruct((B, 1, C_pad), jnp.float32)),
        grid_spec=pltpu.PrefetchScalarGridSpec(
            num_scalar_prefetch=0,
            grid=(B, n_f_tiles),
            in_specs=[
                pl.BlockSpec((None, TM, W_pad), lambda b, f: (b, f, 0)),
                pl.BlockSpec((W_pad, D), lambda b, f: (0, 0)),
                pl.BlockSpec((1, D), lambda b, f: (0, 0)),
                pl.BlockSpec((D, C_pad), lambda b, f: (0, 0)),
                pl.BlockSpec((1, C_pad), lambda b, f: (0, 0)),
            ],
            out_specs=[
                pl.BlockSpec((None, 1, D), lambda b, f: (b, 0, 0)),
                pl.BlockSpec((None, 1, C_pad), lambda b, f: (b, 0, 0)),
            ],
        ),
        compiler_params=pltpu.CompilerParams(
            dimension_semantics=("parallel", "arbitrary"),
            vmem_limit_bytes=vmem_limit),
    )(frames, w_fe_p, b_fe_p, w_head_p, b_head_p)

    mean_embedding = mean3[:, 0, :]
    logits = logits3[:, 0, :C]
    return mean_embedding, logits


def _reference_forward(sig, w_fe, b_fe, w_head, b_head, frame_len):
    """Pure-JAX reference with identical semantics (bf16 MXU inputs, f32 acc)."""
    B, T = sig.shape
    F = T // frame_len
    frames = sig[:, : F * frame_len].reshape(B, F, frame_len)
    frames_bf = frames.astype(jnp.bfloat16).astype(jnp.float32)
    w_fe_bf = w_fe.astype(jnp.bfloat16).astype(jnp.float32)
    emb = jax.nn.gelu(jnp.einsum("bfw,wd->bfd", frames_bf, w_fe_bf) + b_fe[0])
    mean_embedding = emb.mean(axis=1)                       # (B, D)
    logits = mean_embedding @ w_head + b_head[0]            # (B, C)
    return mean_embedding, logits


if __name__ == "__main__":
    # Small, module-consistent shapes.
    B = 2                # batch
    FRAME_LEN = 320      # surrogate conv kernel/stride (wav2vec2-like hop)
    N_FRAMES = 8         # time frames after feature extraction
    T = FRAME_LEN * N_FRAMES   # raw-audio samples = 2560
    D = 768              # embedding_dim (module default)
    C = 2                # n_classes (module default)

    key = jax.random.PRNGKey(0)
    k_sig, k_wfe, k_wh, k_bh = jax.random.split(key, 4)

    # Deterministic synthetic parameters (no checkpoint loading).
    sig = jax.random.normal(k_sig, (B, T), dtype=jnp.float32)
    w_fe = (0.02 * jax.random.normal(k_wfe, (FRAME_LEN, D))).astype(jnp.float32)
    b_fe = jnp.zeros((1, D), dtype=jnp.float32)
    bound = 1.0 / (D ** 0.5)
    w_head = jax.random.uniform(k_wh, (D, C), minval=-bound, maxval=bound,
                                dtype=jnp.float32)
    b_head = jax.random.uniform(k_bh, (1, C), minval=-bound, maxval=bound,
                                dtype=jnp.float32)

    mean_emb, logits = aves_classifier_forward(
        sig, w_fe, b_fe, w_head, b_head, frame_len=FRAME_LEN)
    jax.block_until_ready((mean_emb, logits))

    ref_mean, ref_logits = _reference_forward(
        sig, w_fe, b_fe, w_head, b_head, FRAME_LEN)

    assert mean_emb.shape == (B, D) and logits.shape == (B, C)
    assert jnp.allclose(mean_emb, ref_mean, atol=2e-3, rtol=2e-3)
    assert jnp.allclose(logits, ref_logits, atol=2e-3, rtol=2e-3)

    print("KERNEL_OK")
</pallas_src>

<mosaic_0001>
module attributes {stable_mosaic.version = 11 : i64} {
  func.func @aves_kernel(%arg0: i32, %arg1: i32, %arg2: memref<1x8x384xbf16, #tpu.memory_space<vmem>>, %arg3: memref<384x768xbf16, #tpu.memory_space<vmem>>, %arg4: memref<1x768xf32, #tpu.memory_space<vmem>>, %arg5: memref<768x128xf32, #tpu.memory_space<vmem>>, %arg6: memref<1x128xf32, #tpu.memory_space<vmem>>, %arg7: memref<1x1x768xf32, #tpu.memory_space<vmem>>, %arg8: memref<1x1x128xf32, #tpu.memory_space<vmem>>) attributes {dimension_semantics = [#tpu.dimension_semantics<parallel>, #tpu.dimension_semantics<arbitrary>], iteration_bounds = array<i64: 2, 1>, scalar_prefetch = 0 : i64, scratch_operands = 0 : i64, tpu.core_type = #tpu.core_type<tc>, window_params = [{transform_indices = @transform_0, window_bounds = array<i64: 1, 8, 384>}, {pipeline_mode = #tpu.pipeline_mode<synchronous>, transform_indices = @transform_1, window_bounds = array<i64: 384, 768>}, {pipeline_mode = #tpu.pipeline_mode<synchronous>, transform_indices = @transform_2, window_bounds = array<i64: 1, 768>}, {pipeline_mode = #tpu.pipeline_mode<synchronous>, transform_indices = @transform_3, window_bounds = array<i64: 768, 128>}, {pipeline_mode = #tpu.pipeline_mode<synchronous>, transform_indices = @transform_4, window_bounds = array<i64: 1, 128>}, {transform_indices = @transform_5, window_bounds = array<i64: 1, 1, 768>}, {transform_indices = @transform_6, window_bounds = array<i64: 1, 1, 128>}]} {
    %c0_i32 = arith.constant 0 : i32
    %0 = arith.cmpi eq, %arg1, %c0_i32 : i32
    %1 = arith.extui %0 : i1 to i32
    %c0_i32_0 = arith.constant 0 : i32
    %2 = arith.cmpi ne, %1, %c0_i32_0 : i32
    scf.if %2 {
      %cst_20 = arith.constant 0.000000e+00 : f32
      %34 = vector.broadcast %cst_20 : f32 to vector<1x768xf32>
      %c0_21 = arith.constant 0 : index
      %c0_22 = arith.constant 0 : index
      %c0_23 = arith.constant 0 : index
      %35 = vector.load %arg7[%c0_21, %c0_22, %c0_23] : memref<1x1x768xf32, #tpu.memory_space<vmem>>, vector<1x1x768xf32>
      %36 = vector.shape_cast %35 : vector<1x1x768xf32> to vector<1x768xf32>
      %37 = vector.shape_cast %34 : vector<1x768xf32> to vector<1x1x768xf32>
      tpu.vector_store %arg7[%c0_21, %c0_22, %c0_23], %37 {strides = array<i32>} : memref<1x1x768xf32, #tpu.memory_space<vmem>>, vector<1x1x768xf32>,
    } else {
    }
    %c0 = arith.constant 0 : index
    %c0_1 = arith.constant 0 : index
    %c0_2 = arith.constant 0 : index
    %3 = vector.load %arg2[%c0, %c0_1, %c0_2] : memref<1x8x384xbf16, #tpu.memory_space<vmem>>, vector<1x8x384xbf16>
    %4 = vector.shape_cast %3 : vector<1x8x384xbf16> to vector<8x384xbf16>
    %c0_3 = arith.constant 0 : index
    %c0_4 = arith.constant 0 : index
    %5 = vector.load %arg3[%c0_3, %c0_4] : memref<384x768xbf16, #tpu.memory_space<vmem>>, vector<384x768xbf16>
    %cst = arith.constant dense<0.000000e+00> : vector<8x768xf32>
    %6 = tpu.matmul %4, %5, %cst {dimension_numbers = #tpu.dot_dimension_numbers<[1], [0], [0], [1], [0, 0, 1, 1], [], []>} : vector<8x384xbf16>, vector<384x768xbf16>, vector<8x768xf32> -> vector<8x768xf32>
    %c0_5 = arith.constant 0 : index
    %c0_6 = arith.constant 0 : index
    %7 = vector.load %arg4[%c0_5, %c0_6] : memref<1x768xf32, #tpu.memory_space<vmem>>, vector<1x768xf32>
    %8 = vector.broadcast %7 : vector<1x768xf32> to vector<8x768xf32>
    %9 = arith.addf %6, %8 : vector<8x768xf32>
    %10 = arith.mulf %9, %9 : vector<8x768xf32>
    %11 = arith.mulf %9, %10 : vector<8x768xf32>
    %cst_7 = arith.constant 4.471500e-02 : f32
    %12 = vector.broadcast %cst_7 : f32 to vector<8x768xf32>
    %13 = arith.mulf %12, %11 : vector<8x768xf32>
    %14 = arith.addf %9, %13 : vector<8x768xf32>
    %cst_8 = arith.constant 0.797884583 : f32
    %15 = vector.broadcast %cst_8 : f32 to vector<8x768xf32>
    %16 = arith.mulf %15, %14 : vector<8x768xf32>
    %17 = math.tanh %16 : vector<8x768xf32>
    %cst_9 = arith.constant 1.000000e+00 : f32
    %18 = vector.broadcast %cst_9 : f32 to vector<8x768xf32>
    %19 = arith.addf %18, %17 : vector<8x768xf32>
    %cst_10 = arith.constant 5.000000e-01 : f32
    %20 = vector.broadcast %cst_10 : f32 to vector<8x768xf32>
    %21 = arith.mulf %20, %19 : vector<8x768xf32>
    %22 = arith.mulf %9, %21 : vector<8x768xf32>
    %c0_11 = arith.constant 0 : index
    %c0_12 = arith.constant 0 : index
    %c0_13 = arith.constant 0 : index
    %23 = vector.load %arg7[%c0_11, %c0_12, %c0_13] : memref<1x1x768xf32, #tpu.memory_space<vmem>>, vector<1x1x768xf32>
    %24 = vector.shape_cast %23 : vector<1x1x768xf32> to vector<1x768xf32>
    %cst_14 = arith.constant dense<0.000000e+00> : vector<768xf32>
    %25 = vector.multi_reduction <add>, %22, %cst_14 [0] : vector<8x768xf32> to vector<768xf32>
    %26 = vector.shape_cast %25 : vector<768xf32> to vector<1x768xf32>
    %27 = arith.addf %24, %26 : vector<1x768xf32>
    %c0_15 = arith.constant 0 : index
    %c0_16 = arith.constant 0 : index
    %c0_17 = arith.constant 0 : index
    %28 = vector.load %arg7[%c0_15, %c0_16, %c0_17] : memref<1x1x768xf32, #tpu.memory_space<vmem>>, vector<1x1x768xf32>
    %29 = vector.shape_cast %28 : vector<1x1x768xf32> to vector<1x768xf32>
    %30 = vector.shape_cast %27 : vector<1x768xf32> to vector<1x1x768xf32>
    tpu.vector_store %arg7[%c0_15, %c0_16, %c0_17], %30 {strides = array<i32>} : memref<1x1x768xf32, #tpu.memory_space<vmem>>, vector<1x1x768xf32>,
    %c0_i32_18 = arith.constant 0 : i32
    %31 = arith.cmpi eq, %arg1, %c0_i32_18 : i32
    %32 = arith.extui %31 : i1 to i32
    %c0_i32_19 = arith.constant 0 : i32
    %33 = arith.cmpi ne, %32, %c0_i32_19 : i32
    scf.if %33 {
      %c0_20 = arith.constant 0 : index
      %c0_21 = arith.constant 0 : index
      %c0_22 = arith.constant 0 : index
      %34 = vector.load %arg7[%c0_20, %c0_21, %c0_22] : memref<1x1x768xf32, #tpu.memory_space<vmem>>, vector<1x1x768xf32>
      %35 = vector.shape_cast %34 : vector<1x1x768xf32> to vector<1x768xf32>
      %cst_23 = arith.constant 1.250000e-01 : f32
      %36 = vector.broadcast %cst_23 : f32 to vector<1x768xf32>
      %37 = arith.mulf %35, %36 : vector<1x768xf32>
      %c0_24 = arith.constant 0 : index
      %c0_25 = arith.constant 0 : index
      %c0_26 = arith.constant 0 : index
      %38 = vector.load %arg7[%c0_24, %c0_25, %c0_26] : memref<1x1x768xf32, #tpu.memory_space<vmem>>, vector<1x1x768xf32>
      %39 = vector.shape_cast %38 : vector<1x1x768xf32> to vector<1x768xf32>
      %40 = vector.shape_cast %37 : vector<1x768xf32> to vector<1x1x768xf32>
      tpu.vector_store %arg7[%c0_24, %c0_25, %c0_26], %40 {strides = array<i32>} : memref<1x1x768xf32, #tpu.memory_space<vmem>>, vector<1x1x768xf32>,
      %c0_27 = arith.constant 0 : index
      %c0_28 = arith.constant 0 : index
      %41 = vector.load %arg5[%c0_27, %c0_28] : memref<768x128xf32, #tpu.memory_space<vmem>>, vector<768x128xf32>
      %cst_29 = arith.constant dense<0.000000e+00> : vector<1x128xf32>
      %42 = tpu.matmul %37, %41, %cst_29 {dimension_numbers = #tpu.dot_dimension_numbers<[1], [0], [0], [1], [0, 0, 1, 1], [], []>} : vector<1x768xf32>, vector<768x128xf32>, vector<1x128xf32> -> vector<1x128xf32>
      %c0_30 = arith.constant 0 : index
      %c0_31 = arith.constant 0 : index
      %43 = vector.load %arg6[%c0_30, %c0_31] : memref<1x128xf32, #tpu.memory_space<vmem>>, vector<1x128xf32>
      %44 = arith.addf %42, %43 : vector<1x128xf32>
      %c0_32 = arith.constant 0 : index
      %c0_33 = arith.constant 0 : index
      %c0_34 = arith.constant 0 : index
      %45 = vector.load %arg8[%c0_32, %c0_33, %c0_34] : memref<1x1x128xf32, #tpu.memory_space<vmem>>, vector<1x1x128xf32>
      %46 = vector.shape_cast %45 : vector<1x1x128xf32> to vector<1x128xf32>
      %47 = vector.shape_cast %44 : vector<1x128xf32> to vector<1x1x128xf32>
      tpu.vector_store %arg8[%c0_32, %c0_33, %c0_34], %47 {strides = array<i32>} : memref<1x1x128xf32, #tpu.memory_space<vmem>>, vector<1x1x128xf32>,
    } else {
    }
    return
  }
  func.func @transform_0(%arg0: i32, %arg1: i32) -> (i32, i32, i32) {
    %c0_i32 = arith.constant 0 : i32
    %c0_i32_0 = arith.constant 0 : i32
    return %arg0, %arg1, %c0_i32 : i32, i32, i32
  }
  func.func @transform_1(%arg0: i32, %arg1: i32) -> (i32, i32) {
    %c0_i32 = arith.constant 0 : i32
    %c0_i32_0 = arith.constant 0 : i32
    %c0_i32_1 = arith.constant 0 : i32
    return %c0_i32, %c0_i32_0 : i32, i32
  }
  func.func @transform_2(%arg0: i32, %arg1: i32) -> (i32, i32) {
    %c0_i32 = arith.constant 0 : i32
    %c0_i32_0 = arith.constant 0 : i32
    %c0_i32_1 = arith.constant 0 : i32
    return %c0_i32, %c0_i32_0 : i32, i32
  }
  func.func @transform_3(%arg0: i32, %arg1: i32) -> (i32, i32) {
    %c0_i32 = arith.constant 0 : i32
    %c0_i32_0 = arith.constant 0 : i32
    %c0_i32_1 = arith.constant 0 : i32
    return %c0_i32, %c0_i32_0 : i32, i32
  }
  func.func @transform_4(%arg0: i32, %arg1: i32) -> (i32, i32) {
    %c0_i32 = arith.constant 0 : i32
    %c0_i32_0 = arith.constant 0 : i32
    %c0_i32_1 = arith.constant 0 : i32
    return %c0_i32, %c0_i32_0 : i32, i32
  }
  func.func @transform_5(%arg0: i32, %arg1: i32) -> (i32, i32, i32) {
    %c0_i32 = arith.constant 0 : i32
    %c0_i32_0 = arith.constant 0 : i32
    %c0_i32_1 = arith.constant 0 : i32
    return %arg0, %c0_i32, %c0_i32_0 : i32, i32, i32
  }
  func.func @transform_6(%arg0: i32, %arg1: i32) -> (i32, i32, i32) {
    %c0_i32 = arith.constant 0 : i32
    %c0_i32_0 = arith.constant 0 : i32
    %c0_i32_1 = arith.constant 0 : i32
    return %arg0, %c0_i32, %c0_i32_0 : i32, i32, i32
  }
}

</mosaic_0001>

<llo_original>
// kernel: aves_classifier_forward.1
$region0: #{aves_classifier_forward.1}
  #allocation0 [shape = 'u32[]', space=smem, size = 0x4, offset = 0x4, fixed_abs, tag = 'smem constant byte address 0x4 - core index']
  #allocation1 [shape = 'u32[144,128]{1,0:T(1,128)}', space=vmem, size = 0x12000, scoped, tag = 'internal scratch']
  %s0 = inlined_call_operand.vmem [shape: bf16[2,8,384], index: 0, kind: input, shape index: {}]
  %s1 = inlined_call_operand.vmem [shape: bf16[384,768], index: 1, kind: input, shape index: {}]
  %s2 = inlined_call_operand.vmem [shape: f32[1,768], index: 2, kind: input, shape index: {}]
  %s3 = inlined_call_operand.vmem [shape: f32[768,128], index: 3, kind: input, shape index: {}]
  %s4 = inlined_call_operand.vmem [shape: f32[1,128], index: 4, kind: input, shape index: {}]
  %s5 = inlined_call_operand.vmem [shape: f32[2,1,768], index: 5, kind: output, shape index: {0}]
  %s6 = inlined_call_operand.hbm [shape: f32[2,1,128], index: 6, kind: output, shape index: {1}]
  %7 = xla_tuple %s5, %s6
  %s8 = sld [smem:[#allocation0]]
  $region69: #{aves_classifier_forward.1} parent=0
    _
  %s10 = ssub.s32 1, %s8
  %s11 = scalar_select 0, %s10, %s8
  $region1: #{aves_classifier_forward.1} parent=0
    #allocation2 [shape = 'u8[1024]{0}', space=vmem, size = 0x400, scoped, tag = 'output window, operand 1']
    #allocation3 [shape = 's32[2]{0}', space=sflag, size = 0x8, scoped, tag = 'scoped memory for aves_classifier_forward.1']
    %12 = vsyncpa [#allocation3], 0
    %s13 = scalar_lea.sflag [#allocation3], 1
    %14 = vsyncpa %s13, 0
    loop: start=0, step=1, limit=4
    $region2: #{aves_classifier_forward.1} parent=1 // loop_pre_header
      _
    $region3: #{aves_classifier_forward.1} parent=1 // loop_header
      %s16 = sphi 0, %s20
      %p17 = scmp.ge.s32.totalorder %s16, 4
      %s23 = sphi 0, %s35
      %s24 = sphi 0, %s31
      %s25 = sphi 0, %s23
      %s26 = sphi 0, %s24
      %s27 = sphi 0, %s25
      %s28 = sphi 0, %s26
      %s40 = sphi 0, %s42
      %s43 = sphi 0, %s40
      %s44 = sphi 0, %s43
      %s60 = sphi 0, %s44
      %s64 = sphi 0, %s64
      %s66 = sphi 0, %s64
      %s67 = sphi 0, %s66
      %s81 = sphi 0, %s67
      %s85 = sphi 0, %s85
      %s87 = sphi 0, %s85
      %s88 = sphi 0, %s87
      %s102 = sphi 0, %s88
      %s106 = sphi 0, %s106
      %s108 = sphi 0, %s106
      %s109 = sphi 0, %s108
      %s123 = sphi 0, %s109
      %s127 = sphi 0, %s127
      %s129 = sphi 0, %s127
      %s130 = sphi 0, %s129
      %s144 = sphi 0, %s130
      %s150 = sphi 0, %s152
      %s153 = sphi 0, %s150
      %s154 = sphi 0, %s153
      %s170 = sphi 0, %s154
      %s176 = sphi 0, %s178
      %s179 = sphi 0, %s176
      %s180 = sphi 0, %s179
      %s196 = sphi 0, %s180
    $region4: #{aves_classifier_forward.1} parent=1 // loop_header_branch
      %19 = sbr.rel (%p17) target = $region8
    $region5: #{aves_classifier_forward.1} parent=1 // loop_body
      %s21 = ssub.s32 %s16, 1
      %s22 = ssub.s32 %s16, 2
      %s29 = sadd.s32 1, %s24
      %p30 = scmp.ge.s32.totalorder %s29, 1
      %s31 = scalar_select %p30, 0, %s29
      %s32 = sadd.s32 1, %s23
      %s33 = scalar_select %p30, %s32, %s23
      %p34 = scmp.ge.s32.totalorder %s33, 2
      %s35 = scalar_select %p34, 0, %s33
      %s36 = ssub.s32 %s23, %s35
      %s37 = ssub.s32 %s24, %s31
      %s38 = sor.u32 %s36, %s37
      %p39 = scmp.eq.s32.totalorder %s38, 0
      %s41 = sadd.s32 %s40, 1
      %s42 = scalar_select %p39, %s40, %s41
      %p45 = pneg %p39
      %p46 = scmp.eq.s32.totalorder %s16, 1
      %p47 = por %p45, %p46
      %p48 = scmp.ne.s32.totalorder %s40, %s43
      %p49 = scmp.eq.s32.totalorder %s16, 0
      %p50 = por %p48, %p49
      %p51 = scmp.ne.s32.totalorder %s40, %s43
      %p52 = scmp.eq.s32.totalorder %s21, 1
      %p53 = por %p51, %p52
      %p54 = scmp.ne.s32.totalorder %s43, %s44
      %p55 = scmp.eq.s32.totalorder %s21, 0
      %p56 = por %p54, %p55
      %p57 = scmp.ne.s32.totalorder %s43, %s44
      %p58 = scmp.eq.s32.totalorder %s22, 1
      %p59 = por %p57, %p58
      %p61 = scmp.ne.s32.totalorder %s44, %s60
      %p62 = scmp.eq.s32.totalorder %s22, 0
      %p63 = por %p61, %p62
      %s65 = sadd.s32 %s64, 1
      %p68 = scmp.eq.s32.totalorder %s16, 1
      %p69 = scmp.ne.s32.totalorder %s64, %s66
      %p70 = scmp.eq.s32.totalorder %s16, 0
      %p71 = por %p69, %p70
      %p72 = scmp.ne.s32.totalorder %s64, %s66
      %p73 = scmp.eq.s32.totalorder %s21, 1
      %p74 = por %p72, %p73
      %p75 = scmp.ne.s32.totalorder %s66, %s67
      %p76 = scmp.eq.s32.totalorder %s21, 0
      %p77 = por %p75, %p76
      %p78 = scmp.ne.s32.totalorder %s66, %s67
      %p79 = scmp.eq.s32.totalorder %s22, 1
      %p80 = por %p78, %p79
      %p82 = scmp.ne.s32.totalorder %s67, %s81
      %p83 = scmp.eq.s32.totalorder %s22, 0
      %p84 = por %p82, %p83
      %s86 = sadd.s32 %s85, 1
      %p89 = scmp.eq.s32.totalorder %s16, 1
      %p90 = scmp.ne.s32.totalorder %s85, %s87
      %p91 = scmp.eq.s32.totalorder %s16, 0
      %p92 = por %p90, %p91
      %p93 = scmp.ne.s32.totalorder %s85, %s87
      %p94 = scmp.eq.s32.totalorder %s21, 1
      %p95 = por %p93, %p94
      %p96 = scmp.ne.s32.totalorder %s87, %s88
      %p97 = scmp.eq.s32.totalorder %s21, 0
      %p98 = por %p96, %p97
      %p99 = scmp.ne.s32.totalorder %s87, %s88
      %p100 = scmp.eq.s32.totalorder %s22, 1
      %p101 = por %p99, %p100
      %p103 = scmp.ne.s32.totalorder %s88, %s102
      %p104 = scmp.eq.s32.totalorder %s22, 0
      %p105 = por %p103, %p104
      %s107 = sadd.s32 %s106, 1
      %p110 = scmp.eq.s32.totalorder %s16, 1
      %p111 = scmp.ne.s32.totalorder %s106, %s108
      %p112 = scmp.eq.s32.totalorder %s16, 0
      %p113 = por %p111, %p112
      %p114 = scmp.ne.s32.totalorder %s106, %s108
      %p115 = scmp.eq.s32.totalorder %s21, 1
      %p116 = por %p114, %p115
      %p117 = scmp.ne.s32.totalorder %s108, %s109
      %p118 = scmp.eq.s32.totalorder %s21, 0
      %p119 = por %p117, %p118
      %p120 = scmp.ne.s32.totalorder %s108, %s109
      %p121 = scmp.eq.s32.totalorder %s22, 1
      %p122 = por %p120, %p121
      %p124 = scmp.ne.s32.totalorder %s109, %s123
      %p125 = scmp.eq.s32.totalorder %s22, 0
      %p126 = por %p124, %p125
      %s128 = sadd.s32 %s127, 1
      %p131 = scmp.eq.s32.totalorder %s16, 1
      %p132 = scmp.ne.s32.totalorder %s127, %s129
      %p133 = scmp.eq.s32.totalorder %s16, 0
      %p134 = por %p132, %p133
      %p135 = scmp.ne.s32.totalorder %s127, %s129
      %p136 = scmp.eq.s32.totalorder %s21, 1
      %p137 = por %p135, %p136
      %p138 = scmp.ne.s32.totalorder %s129, %s130
      %p139 = scmp.eq.s32.totalorder %s21, 0
      %p140 = por %p138, %p139
      %p141 = scmp.ne.s32.totalorder %s129, %s130
      %p142 = scmp.eq.s32.totalorder %s22, 1
      %p143 = por %p141, %p142
      %p145 = scmp.ne.s32.totalorder %s130, %s144
      %p146 = scmp.eq.s32.totalorder %s22, 0
      %p147 = por %p145, %p146
      %s148 = ssub.s32 %s23, %s35
      %p149 = scmp.eq.s32.totalorder %s148, 0
      %s151 = sadd.s32 %s150, 1
      %s152 = scalar_select %p149, %s150, %s151
      %p155 = pneg %p149
      %p156 = scmp.eq.s32.totalorder %s16, 1
      %p157 = por %p155, %p156
      %p158 = scmp.ne.s32.totalorder %s150, %s153
      %p159 = scmp.eq.s32.totalorder %s16, 0
      %p160 = por %p158, %p159
      %p161 = scmp.ne.s32.totalorder %s150, %s153
      %p162 = scmp.eq.s32.totalorder %s21, 1
      %p163 = por %p161, %p162
      %p164 = scmp.ne.s32.totalorder %s153, %s154
      %p165 = scmp.eq.s32.totalorder %s21, 0
      %p166 = por %p164, %p165
      %p167 = scmp.ne.s32.totalorder %s153, %s154
      %p168 = scmp.eq.s32.totalorder %s22, 1
      %p169 = por %p167, %p168
      %p171 = scmp.ne.s32.totalorder %s154, %s170
      %p172 = scmp.eq.s32.totalorder %s22, 0
      %p173 = por %p171, %p172
      %s174 = ssub.s32 %s23, %s35
      %p175 = scmp.eq.s32.totalorder %s174, 0
      %s177 = sadd.s32 %s176, 1
      %s178 = scalar_select %p175, %s176, %s177
      %p181 = pneg %p175
      %p182 = scmp.eq.s32.totalorder %s16, 1
      %p183 = por %p181, %p182
      %p184 = scmp.ne.s32.totalorder %s176, %s179
      %p185 = scmp.eq.s32.totalorder %s16, 0
      %p186 = por %p184, %p185
      %p187 = scmp.ne.s32.totalorder %s176, %s179
      %p188 = scmp.eq.s32.totalorder %s21, 1
      %p189 = por %p187, %p188
      %p190 = scmp.ne.s32.totalorder %s179, %s180
      %p191 = scmp.eq.s32.totalorder %s21, 0
      %p192 = por %p190, %p191
      %p193 = scmp.ne.s32.totalorder %s179, %s180
      %p194 = scmp.eq.s32.totalorder %s22, 1
      %p195 = por %p193, %p194
      %p197 = scmp.ne.s32.totalorder %s180, %s196
      %p198 = scmp.eq.s32.totalorder %s22, 0
      %p199 = por %p197, %p198
      %p200 = scmp.le.s32.totalorder 1, %s16
      %p201 = scmp.lt.s32.totalorder %s16, 3
      %p202 = pnand %p200, %p201
      %p203 = pneg %p202
      // Predicated region
      $region9: #{aves_classifier_forward.1} parent=5 // pred_check
        _
      $region10: #{aves_classifier_forward.1} parent=5 // pred_check_branch
        %205 = sbr.rel (%p202) target = $region12
      $region11: #{aves_classifier_forward.1} parent=5 // pred_region
        %s206 = ssub.s32 %s16, 1
        // Predicated region
        $region13: #{aves_classifier_forward.1} parent=11 // pred_check
          %p207 = pneg %p77
        $region14: #{aves_classifier_forward.1} parent=11 // pred_check_branch
          %209 = sbr.rel (%p207) target = $region16
        $region15: #{aves_classifier_forward.1} parent=11 // pred_region
          _
        $region16: #{aves_classifier_forward.1} parent=11 // pred_fallthru
          _
        // Predicated region
        $region17: #{aves_classifier_forward.1} parent=11 // pred_check
          %p210 = pneg %p98
        $region18: #{aves_classifier_forward.1} parent=11 // pred_check_branch
          %212 = sbr.rel (%p210) target = $region20
        $region19: #{aves_classifier_forward.1} parent=11 // pred_region
          _
        $region20: #{aves_classifier_forward.1} parent=11 // pred_fallthru
          _
        // Predicated region
        $region21: #{aves_classifier_forward.1} parent=11 // pred_check
          %p213 = pneg %p119
        $region22: #{aves_classifier_forward.1} parent=11 // pred_check_branch
          %215 = sbr.rel (%p213) target = $region24
        $region23: #{aves_classifier_forward.1} parent=11 // pred_region
          _
        $region24: #{aves_classifier_forward.1} parent=11 // pred_fallthru
          _
        // Predicated region
        $region25: #{aves_classifier_forward.1} parent=11 // pred_check
          %p216 = pneg %p140
        $region26: #{aves_classifier_forward.1} parent=11 // pred_check_branch
          %218 = sbr.rel (%p216) target = $region28
        $region27: #{aves_classifier_forward.1} parent=11 // pred_region
          _
        $region28: #{aves_classifier_forward.1} parent=11 // pred_fallthru
          _
      $region12: #{aves_classifier_forward.1} parent=5 // pred_fallthru
        _
      %p219 = scmp.lt.s32.totalorder %s16, 2
      // Predicated region
      $region29: #{aves_classifier_forward.1} parent=5 // pred_check
        %p220 = pneg %p219
      $region30: #{aves_classifier_forward.1} parent=5 // pred_check_branch
        %222 = sbr.rel (%p220) target = $region32
      $region31: #{aves_classifier_forward.1} parent=5 // pred_region
        // Predicated region
        $region33: #{aves_classifier_forward.1} parent=31 // pred_check
          %p223 = pneg %p50
        $region34: #{aves_classifier_forward.1} parent=31 // pred_check_branch
          %225 = sbr.rel (%p223) target = $region36
        $region35: #{aves_classifier_forward.1} parent=31 // pred_region
          %p226 = scmp.lt.s32.totalorder %s23, 1
          %s227 = scalar_select %p226, %s23, 1
          %p228 = scmp.lt.s32.totalorder %s24, 0
          %s229 = scalar_select %p228, %s24, 0
          %s230 = smul.addr %s229, 3
          %s231 = smul.addr %s227, 3
          %s232 = sadd.s32 %s230, %s231
          %s233 = smul.addr %s232, 4
          %s234 = scalar_lea.vmem %s0, %s233
        $region36: #{aves_classifier_forward.1} parent=31 // pred_fallthru
          _
      $region32: #{aves_classifier_forward.1} parent=5 // pred_fallthru
        _
      %p235 = scmp.le.s32.totalorder 1, %s16
      %p236 = scmp.lt.s32.totalorder %s16, 3
      %p237 = pnand %p235, %p236
      %p238 = pneg %p237
      // Predicated region
      $region37: #{aves_classifier_forward.1} parent=5 // pred_check
        _
      $region38: #{aves_classifier_forward.1} parent=5 // pred_check_branch
        %240 = sbr.rel (%p237) target = $region40
      $region39: #{aves_classifier_forward.1} parent=5 // pred_region
        %s241 = ssub.s32 %s16, 1
        %p242 = scmp.lt.s32.totalorder %s25, 1
        %s243 = scalar_select %p242, %s25, 1
        %p244 = scmp.lt.s32.totalorder %s26, 0
        %s245 = scalar_select %p244, %s26, 0
        %s246 = smul.addr %s245, 3
        %s247 = smul.addr %s243, 3
        %s248 = sadd.s32 %s246, %s247
        %s249 = smul.addr %s248, 4
        %s250 = scalar_lea.vmem %s0, %s249
        %p251 = pneg %p56
        %p252 = pneg %p53
        %p253 = pneg %p77
        %p254 = pneg %p74
        %p255 = pneg %p98
        %p256 = pneg %p95
        %p257 = pneg %p119
        %p258 = pneg %p116
        %p259 = pneg %p140
        %p260 = pneg %p137
        %p261 = pneg %p166
        %p262 = pneg %p163
        %p263 = scmp.lt.s32.totalorder %s25, 1
        %s264 = scalar_select %p263, %s25, 1
        %s265 = smul.addr %s264, 6
        %s266 = scalar_lea.vmem %s5, %s265
        %p267 = pneg %p192
        %p268 = pneg %p189
        %s269 = sand.u32 %s179, 1
        %s270 = scalar_lea.sflag [#allocation3], %s269
        %s271 = sand.u32 %s179, 1
        %s272 = scalar_lea.vmem [#allocation2], %s271
        %p273 = scmp.lt.s32.totalorder %s25, 1
        %s274 = scalar_select %p273, %s25, 1
        %p275 = scmp.lt.s32.totalorder %s26, 0
        %s276 = scalar_select %p275, %s26, 0
        %s277 = smul.addr %s276, 3
        %s278 = smul.addr %s274, 3
        %s279 = sadd.s32 %s277, %s278
        %s280 = smul.addr %s279, 4
        %s281 = scalar_lea.vmem %s0, %s280
        %p282 = scmp.lt.s32.totalorder %s25, 1
        %s283 = scalar_select %p282, %s25, 1
        %s284 = smul.addr %s283, 6
        %s285 = scalar_lea.vmem %s5, %s284
        %p287 = scmp.eq.s32.totalorder %s26, 0
        // Predicated region
        $region41: #{aves_classifier_forward.1} parent=39 // pred_check
          %p288 = pneg %p287
        $region42: #{aves_classifier_forward.1} parent=39 // pred_check_branch
          %290 = sbr.rel (%p288) target = $region44
        $region43: #{aves_classifier_forward.1} parent=39 // pred_region
          %v291 = vlaneseq
          %vm292 = vcmp.ge.s32.totalorder %v291, 0
          %vm293 = vcmp.lt.s32.totalorder %v291, 768
          %vm294 = vmand %vm292, %vm293
          %295 = vst.msk [vmem:[%s285] sm:$0x3f] %vm294, 0.0
        $region44: #{aves_classifier_forward.1} parent=39 // pred_fallthru
          _
        %v296 = vld [vmem:[%s281] sm:$0xff]
        %v297 = vld [vmem:[%s281 + $0x8] sm:$0xf]
        %v298 = vld [vmem:[%s1] sm:$0xff]
        %v299 = vld [vmem:[%s1 + $0x8] sm:$0xff]
        %v300 = vld [vmem:[%s1 + $0x10] sm:$0xff]
        %v301 = vld [vmem:[%s1 + $0x18] sm:$0xff]
        %v302 = vld [vmem:[%s1 + $0x20] sm:$0xff]
        %v303 = vld [vmem:[%s1 + $0x28] sm:$0xff]
        %v304 = vld [vmem:[%s1 + $0x30] sm:$0xff]
        %v305 = vld [vmem:[%s1 + $0x38] sm:$0xff]
        %v306 = vld [vmem:[%s1 + $0x40] sm:$0xff]
        %v307 = vld [vmem:[%s1 + $0x48] sm:$0xff]
        %v308 = vld [vmem:[%s1 + $0x50] sm:$0xff]
        %v309 = vld [vmem:[%s1 + $0x58] sm:$0xff]
        %v310 = vld [vmem:[%s1 + $0x60] sm:$0xff]
        %v311 = vld [vmem:[%s1 + $0x68] sm:$0xff]
        %v312 = vld [vmem:[%s1 + $0x70] sm:$0xff]
        %v313 = vld [vmem:[%s1 + $0x78] sm:$0xff]
        %v314 = vld [vmem:[%s1 + $0x80] sm:$0xff]
        %v315 = vld [vmem:[%s1 + $0x88] sm:$0xff]
        %v316 = vld [vmem:[%s1 + $0x90] sm:$0xff]
        %v317 = vld [vmem:[%s1 + $0x98] sm:$0xff]
        %v318 = vld [vmem:[%s1 + $0xa0] sm:$0xff]
        %v319 = vld [vmem:[%s1 + $0xa8] sm:$0xff]
        %v320 = vld [vmem:[%s1 + $0xb0] sm:$0xff]
        %v321 = vld [vmem:[%s1 + $0xb8] sm:$0xff]
        %v322 = vld [vmem:[%s1 + $0xc0] sm:$0xff]
        %v323 = vld [vmem:[%s1 + $0xc8] sm:$0xff]
        %v324 = vld [vmem:[%s1 + $0xd0] sm:$0xff]
        %v325 = vld [vmem:[%s1 + $0xd8] sm:$0xff]
        %v326 = vld [vmem:[%s1 + $0xe0] sm:$0xff]
        %v327 = vld [vmem:[%s1 + $0xe8] sm:$0xff]
        %v328 = vld [vmem:[%s1 + $0xf0] sm:$0xff]
        %v329 = vld [vmem:[%s1 + $0xf8] sm:$0xff]
        %v330 = vld [vmem:[%s1 + $0x100] sm:$0xff]
        %v331 = vld [vmem:[%s1 + $0x108] sm:$0xff]
        %v332 = vld [vmem:[%s1 + $0x110] sm:$0xff]
        %v333 = vld [vmem:[%s1 + $0x118] sm:$0xff]
        %v334 = vld [vmem:[%s1 + $0x120] sm:$0xff]
        %v335 = vld [vmem:[%s1 + $0x128] sm:$0xff]
        %v336 = vld [vmem:[%s1 + $0x130] sm:$0xff]
        %v337 = vld [vmem:[%s1 + $0x138] sm:$0xff]
        %v338 = vld [vmem:[%s1 + $0x140] sm:$0xff]
        %v339 = vld [vmem:[%s1 + $0x148] sm:$0xff]
        %v340 = vld [vmem:[%s1 + $0x150] sm:$0xff]
        %v341 = vld [vmem:[%s1 + $0x158] sm:$0xff]
        %v342 = vld [vmem:[%s1 + $0x160] sm:$0xff]
        %v343 = vld [vmem:[%s1 + $0x168] sm:$0xff]
        %v344 = vld [vmem:[%s1 + $0x170] sm:$0xff]
        %v345 = vld [vmem:[%s1 + $0x178] sm:$0xff]
        %v346 = vld [vmem:[%s1 + $0x180] sm:$0xff]
        %v347 = vld [vmem:[%s1 + $0x188] sm:$0xff]
        %v348 = vld [vmem:[%s1 + $0x190] sm:$0xff]
        %v349 = vld [vmem:[%s1 + $0x198] sm:$0xff]
        %v350 = vld [vmem:[%s1 + $0x1a0] sm:$0xff]
        %v351 = vld [vmem:[%s1 + $0x1a8] sm:$0xff]
        %v352 = vld [vmem:[%s1 + $0x1b0] sm:$0xff]
        %v353 = vld [vmem:[%s1 + $0x1b8] sm:$0xff]
        %v354 = vld [vmem:[%s1 + $0x1c0] sm:$0xff]
        %v355 = vld [vmem:[%s1 + $0x1c8] sm:$0xff]
        %v356 = vld [vmem:[%s1 + $0x1d0] sm:$0xff]
        %v357 = vld [vmem:[%s1 + $0x1d8] sm:$0xff]
        %v358 = vld [vmem:[%s1 + $0x1e0] sm:$0xff]
        %v359 = vld [vmem:[%s1 + $0x1e8] sm:$0xff]
        %v360 = vld [vmem:[%s1 + $0x1f0] sm:$0xff]
        %v361 = vld [vmem:[%s1 + $0x1f8] sm:$0xff]
        %v362 = vld [vmem:[%s1 + $0x200] sm:$0xff]
        %v363 = vld [vmem:[%s1 + $0x208] sm:$0xff]
        %v364 = vld [vmem:[%s1 + $0x210] sm:$0xff]
        %v365 = vld [vmem:[%s1 + $0x218] sm:$0xff]
        %v366 = vld [vmem:[%s1 + $0x220] sm:$0xff]
        %v367 = vld [vmem:[%s1 + $0x228] sm:$0xff]
        %v368 = vld [vmem:[%s1 + $0x230] sm:$0xff]
        %v369 = vld [vmem:[%s1 + $0x238] sm:$0xff]
        %v370 = vld [vmem:[%s1 + $0x240] sm:$0xff]
        %v371 = vld [vmem:[%s1 + $0x248] sm:$0xff]
        %v372 = vld [vmem:[%s1 + $0x250] sm:$0xff]
        %v373 = vld [vmem:[%s1 + $0x258] sm:$0xff]
        %v374 = vld [vmem:[%s1 + $0x260] sm:$0xff]
        %v375 = vld [vmem:[%s1 + $0x268] sm:$0xff]
        %v376 = vld [vmem:[%s1 + $0x270] sm:$0xff]
        %v377 = vld [vmem:[%s1 + $0x278] sm:$0xff]
        %v378 = vld [vmem:[%s1 + $0x280] sm:$0xff]
        %v379 = vld [vmem:[%s1 + $0x288] sm:$0xff]
        %v380 = vld [vmem:[%s1 + $0x290] sm:$0xff]
        %v381 = vld [vmem:[%s1 + $0x298] sm:$0xff]
        %v382 = vld [vmem:[%s1 + $0x2a0] sm:$0xff]
        %v383 = vld [vmem:[%s1 + $0x2a8] sm:$0xff]
        %v384 = vld [vmem:[%s1 + $0x2b0] sm:$0xff]
        %v385 = vld [vmem:[%s1 + $0x2b8] sm:$0xff]
        %v386 = vld [vmem:[%s1 + $0x2c0] sm:$0xff]
        %v387 = vld [vmem:[%s1 + $0x2c8] sm:$0xff]
        %v388 = vld [vmem:[%s1 + $0x2d0] sm:$0xff]
        %v389 = vld [vmem:[%s1 + $0x2d8] sm:$0xff]
        %v390 = vld [vmem:[%s1 + $0x2e0] sm:$0xff]
        %v391 = vld [vmem:[%s1 + $0x2e8] sm:$0xff]
        %v392 = vld [vmem:[%s1 + $0x2f0] sm:$0xff]
        %v393 = vld [vmem:[%s1 + $0x2f8] sm:$0xff]
        %v394 = vld [vmem:[%s1 + $0x300] sm:$0xff]
        %v395 = vld [vmem:[%s1 + $0x308] sm:$0xff]
        %v396 = vld [vmem:[%s1 + $0x310] sm:$0xff]
        %v397 = vld [vmem:[%s1 + $0x318] sm:$0xff]
        %v398 = vld [vmem:[%s1 + $0x320] sm:$0xff]
        %v399 = vld [vmem:[%s1 + $0x328] sm:$0xff]
        %v400 = vld [vmem:[%s1 + $0x330] sm:$0xff]
        %v401 = vld [vmem:[%s1 + $0x338] sm:$0xff]
        %v402 = vld [vmem:[%s1 + $0x340] sm:$0xff]
        %v403 = vld [vmem:[%s1 + $0x348] sm:$0xff]
        %v404 = vld [vmem:[%s1 + $0x350] sm:$0xff]
        %v405 = vld [vmem:[%s1 + $0x358] sm:$0xff]
        %v406 = vld [vmem:[%s1 + $0x360] sm:$0xff]
        %v407 = vld [vmem:[%s1 + $0x368] sm:$0xff]
        %v408 = vld [vmem:[%s1 + $0x370] sm:$0xff]
        %v409 = vld [vmem:[%s1 + $0x378] sm:$0xff]
        %v410 = vld [vmem:[%s1 + $0x380] sm:$0xff]
        %v411 = vld [vmem:[%s1 + $0x388] sm:$0xff]
        %v412 = vld [vmem:[%s1 + $0x390] sm:$0xff]
        %v413 = vld [vmem:[%s1 + $0x398] sm:$0xff]
        %v414 = vld [vmem:[%s1 + $0x3a0] sm:$0xff]
        %v415 = vld [vmem:[%s1 + $0x3a8] sm:$0xff]
        %v416 = vld [vmem:[%s1 + $0x3b0] sm:$0xff]
        %v417 = vld [vmem:[%s1 + $0x3b8] sm:$0xff]
        %v418 = vld [vmem:[%s1 + $0x3c0] sm:$0xff]
        %v419 = vld [vmem:[%s1 + $0x3c8] sm:$0xff]
        %v420 = vld [vmem:[%s1 + $0x3d0] sm:$0xff]
        %v421 = vld [vmem:[%s1 + $0x3d8] sm:$0xff]
        %v422 = vld [vmem:[%s1 + $0x3e0] sm:$0xff]
        %v423 = vld [vmem:[%s1 + $0x3e8] sm:$0xff]
        %v424 = vld [vmem:[%s1 + $0x3f0] sm:$0xff]
        %v425 = vld [vmem:[%s1 + $0x3f8] sm:$0xff]
        %v426 = vld [vmem:[%s1 + $0x400] sm:$0xff]
        %v427 = vld [vmem:[%s1 + $0x408] sm:$0xff]
        %v428 = vld [vmem:[%s1 + $0x410] sm:$0xff]
        %v429 = vld [vmem:[%s1 + $0x418] sm:$0xff]
        %v430 = vld [vmem:[%s1 + $0x420] sm:$0xff]
        %v431 = vld [vmem:[%s1 + $0x428] sm:$0xff]
        %v432 = vld [vmem:[%s1 + $0x430] sm:$0xff]
        %v433 = vld [vmem:[%s1 + $0x438] sm:$0xff]
        %v434 = vld [vmem:[%s1 + $0x440] sm:$0xff]
        %v435 = vld [vmem:[%s1 + $0x448] sm:$0xff]
        %v436 = vld [vmem:[%s1 + $0x450] sm:$0xff]
        %v437 = vld [vmem:[%s1 + $0x458] sm:$0xff]
        %v438 = vld [vmem:[%s1 + $0x460] sm:$0xff]
        %v439 = vld [vmem:[%s1 + $0x468] sm:$0xff]
        %v440 = vld [vmem:[%s1 + $0x470] sm:$0xff]
        %v441 = vld [vmem:[%s1 + $0x478] sm:$0xff]
        %v442 = vld [vmem:[%s2] sm:$0x3f]
        %v444 = vlaneseq
        %v445 = vshrl.u32 %v444, 7
        %v446 = vsub.s32 0, %v445
        %v447 = vrot.slane %v442, %v446
        %v448 = vlaneseq
        %v449 = vshrl.u32 %v448, 7
        %v450 = vsub.s32 1, %v449
        %v451 = vrot.slane %v442, %v450
        %v452 = vlaneseq
        %v453 = vshrl.u32 %v452, 7
        %v454 = vsub.s32 2, %v453
        %v455 = vrot.slane %v442, %v454
        %v456 = vlaneseq
        %v457 = vshrl.u32 %v456, 7
        %v458 = vsub.s32 3, %v457
        %v459 = vrot.slane %v442, %v458
        %v460 = vlaneseq
        %v461 = vshrl.u32 %v460, 7
        %v462 = vsub.s32 4, %v461
        %v463 = vrot.slane %v442, %v462
        %v464 = vlaneseq
        %v465 = vshrl.u32 %v464, 7
        %v466 = vsub.s32 5, %v465
        %v467 = vrot.slane %v442, %v466
        %v476 = vunpack.c.l.b16 %v296
        %v477 = vunpack.c.h.b16 %v296
        %v478 = vunpack.c.l.b16 %v297
        %v479 = vpack.c.b16 %v476, %v476
        %v480 = vpack.c.b16 %v477, %v477
        %v481 = vpack.c.b16 %v478, %v478
        %v629 = vunpack.c.l.b16 %v298
        %v630 = vunpack.c.h.b16 %v298
        %v631 = vunpack.c.l.b16 %v299
        %v632 = vunpack.c.h.b16 %v299
        %v633 = vunpack.c.l.b16 %v300
        %v634 = vunpack.c.h.b16 %v300
        %v635 = vunpack.c.l.b16 %v301
        %v636 = vunpack.c.h.b16 %v301
        %v637 = vunpack.c.l.b16 %v302
        %v638 = vunpack.c.h.b16 %v302
        %v639 = vunpack.c.l.b16 %v303
        %v640 = vunpack.c.h.b16 %v303
        %v641 = vunpack.c.l.b16 %v304
        %v642 = vunpack.c.h.b16 %v304
        %v643 = vunpack.c.l.b16 %v305
        %v644 = vunpack.c.h.b16 %v305
        %v645 = vunpack.c.l.b16 %v306
        %v646 = vunpack.c.h.b16 %v306
        %v647 = vunpack.c.l.b16 %v307
        %v648 = vunpack.c.h.b16 %v307
        %v649 = vunpack.c.l.b16 %v308
        %v650 = vunpack.c.h.b16 %v308
        %v651 = vunpack.c.l.b16 %v309
        %v652 = vunpack.c.h.b16 %v309
        %v653 = vunpack.c.l.b16 %v310
        %v654 = vunpack.c.h.b16 %v310
        %v655 = vunpack.c.l.b16 %v311
        %v656 = vunpack.c.h.b16 %v311
        %v657 = vunpack.c.l.b16 %v312
        %v658 = vunpack.c.h.b16 %v312
        %v659 = vunpack.c.l.b16 %v313
        %v660 = vunpack.c.h.b16 %v313
        %v661 = vunpack.c.l.b16 %v314
        %v662 = vunpack.c.h.b16 %v314
        %v663 = vunpack.c.l.b16 %v315
        %v664 = vunpack.c.h.b16 %v315
        %v665 = vunpack.c.l.b16 %v316
        %v666 = vunpack.c.h.b16 %v316
        %v667 = vunpack.c.l.b16 %v317
        %v668 = vunpack.c.h.b16 %v317
        %v669 = vunpack.c.l.b16 %v318
        %v670 = vunpack.c.h.b16 %v318
        %v671 = vunpack.c.l.b16 %v319
        %v672 = vunpack.c.h.b16 %v319
        %v673 = vunpack.c.l.b16 %v320
        %v674 = vunpack.c.h.b16 %v320
        %v675 = vunpack.c.l.b16 %v321
        %v676 = vunpack.c.h.b16 %v321
        %v677 = vunpack.c.l.b16 %v322
        %v678 = vunpack.c.h.b16 %v322
        %v679 = vunpack.c.l.b16 %v323
        %v680 = vunpack.c.h.b16 %v323
        %v681 = vunpack.c.l.b16 %v324
        %v682 = vunpack.c.h.b16 %v324
        %v683 = vunpack.c.l.b16 %v325
        %v684 = vunpack.c.h.b16 %v325
        %v685 = vunpack.c.l.b16 %v326
        %v686 = vunpack.c.h.b16 %v326
        %v687 = vunpack.c.l.b16 %v327
        %v688 = vunpack.c.h.b16 %v327
        %v689 = vunpack.c.l.b16 %v328
        %v690 = vunpack.c.h.b16 %v328
        %v691 = vunpack.c.l.b16 %v329
        %v692 = vunpack.c.h.b16 %v329
        %v693 = vunpack.c.l.b16 %v330
        %v694 = vunpack.c.h.b16 %v330
        %v695 = vunpack.c.l.b16 %v331
        %v696 = vunpack.c.h.b16 %v331
        %v697 = vunpack.c.l.b16 %v332
        %v698 = vunpack.c.h.b16 %v332
        %v699 = vunpack.c.l.b16 %v333
        %v700 = vunpack.c.h.b16 %v333
        %v701 = vunpack.c.l.b16 %v334
        %v702 = vunpack.c.h.b16 %v334
        %v703 = vunpack.c.l.b16 %v335
        %v704 = vunpack.c.h.b16 %v335
        %v705 = vunpack.c.l.b16 %v336
        %v706 = vunpack.c.h.b16 %v336
        %v707 = vunpack.c.l.b16 %v337
        %v708 = vunpack.c.h.b16 %v337
        %v709 = vunpack.c.l.b16 %v338
        %v710 = vunpack.c.h.b16 %v338
        %v711 = vunpack.c.l.b16 %v339
        %v712 = vunpack.c.h.b16 %v339
        %v713 = vunpack.c.l.b16 %v340
        %v714 = vunpack.c.h.b16 %v340
        %v715 = vunpack.c.l.b16 %v341
        %v716 = vunpack.c.h.b16 %v341
        %v717 = vunpack.c.l.b16 %v342
        %v718 = vunpack.c.h.b16 %v342
        %v719 = vunpack.c.l.b16 %v343
        %v720 = vunpack.c.h.b16 %v343
        %v721 = vunpack.c.l.b16 %v344
        %v722 = vunpack.c.h.b16 %v344
        %v723 = vunpack.c.l.b16 %v345
        %v724 = vunpack.c.h.b16 %v345
        %v725 = vunpack.c.l.b16 %v346
        %v726 = vunpack.c.h.b16 %v346
        %v727 = vunpack.c.l.b16 %v347
        %v728 = vunpack.c.h.b16 %v347
        %v729 = vunpack.c.l.b16 %v348
        %v730 = vunpack.c.h.b16 %v348
        %v731 = vunpack.c.l.b16 %v349
        %v732 = vunpack.c.h.b16 %v349
        %v733 = vunpack.c.l.b16 %v350
        %v734 = vunpack.c.h.b16 %v350
        %v735 = vunpack.c.l.b16 %v351
        %v736 = vunpack.c.h.b16 %v351
        %v737 = vunpack.c.l.b16 %v352
        %v738 = vunpack.c.h.b16 %v352
        %v739 = vunpack.c.l.b16 %v353
        %v740 = vunpack.c.h.b16 %v353
        %v741 = vunpack.c.l.b16 %v354
        %v742 = vunpack.c.h.b16 %v354
        %v743 = vunpack.c.l.b16 %v355
        %v744 = vunpack.c.h.b16 %v355
        %v745 = vunpack.c.l.b16 %v356
        %v746 = vunpack.c.h.b16 %v356
        %v747 = vunpack.c.l.b16 %v357
        %v748 = vunpack.c.h.b16 %v357
        %v749 = vunpack.c.l.b16 %v358
        %v750 = vunpack.c.h.b16 %v358
        %v751 = vunpack.c.l.b16 %v359
        %v752 = vunpack.c.h.b16 %v359
        %v753 = vunpack.c.l.b16 %v360
        %v754 = vunpack.c.h.b16 %v360
        %v755 = vunpack.c.l.b16 %v361
        %v756 = vunpack.c.h.b16 %v361
        %v757 = vunpack.c.l.b16 %v362
        %v758 = vunpack.c.h.b16 %v362
        %v759 = vunpack.c.l.b16 %v363
        %v760 = vunpack.c.h.b16 %v363
        %v761 = vunpack.c.l.b16 %v364
        %v762 = vunpack.c.h.b16 %v364
        %v763 = vunpack.c.l.b16 %v365
        %v764 = vunpack.c.h.b16 %v365
        %v765 = vunpack.c.l.b16 %v366
        %v766 = vunpack.c.h.b16 %v366
        %v767 = vunpack.c.l.b16 %v367
        %v768 = vunpack.c.h.b16 %v367
        %v769 = vunpack.c.l.b16 %v368
        %v770 = vunpack.c.h.b16 %v368
        %v771 = vunpack.c.l.b16 %v369
        %v772 = vunpack.c.h.b16 %v369
        %v773 = vunpack.c.l.b16 %v370
        %v774 = vunpack.c.h.b16 %v370
        %v775 = vunpack.c.l.b16 %v371
        %v776 = vunpack.c.h.b16 %v371
        %v777 = vunpack.c.l.b16 %v372
        %v778 = vunpack.c.h.b16 %v372
        %v779 = vunpack.c.l.b16 %v373
        %v780 = vunpack.c.h.b16 %v373
        %v781 = vunpack.c.l.b16 %v374
        %v782 = vunpack.c.h.b16 %v374
        %v783 = vunpack.c.l.b16 %v375
        %v784 = vunpack.c.h.b16 %v375
        %v785 = vunpack.c.l.b16 %v376
        %v786 = vunpack.c.h.b16 %v376
        %v787 = vunpack.c.l.b16 %v377
        %v788 = vunpack.c.h.b16 %v377
        %v789 = vunpack.c.l.b16 %v378
        %v790 = vunpack.c.h.b16 %v378
        %v791 = vunpack.c.l.b16 %v379
        %v792 = vunpack.c.h.b16 %v379
        %v793 = vunpack.c.l.b16 %v380
        %v794 = vunpack.c.h.b16 %v380
        %v795 = vunpack.c.l.b16 %v381
        %v796 = vunpack.c.h.b16 %v381
        %v797 = vunpack.c.l.b16 %v382
        %v798 = vunpack.c.h.b16 %v382
        %v799 = vunpack.c.l.b16 %v383
        %v800 = vunpack.c.h.b16 %v383
        %v801 = vunpack.c.l.b16 %v384
        %v802 = vunpack.c.h.b16 %v384
        %v803 = vunpack.c.l.b16 %v385
        %v804 = vunpack.c.h.b16 %v385
        %v805 = vunpack.c.l.b16 %v386
        %v806 = vunpack.c.h.b16 %v386
        %v807 = vunpack.c.l.b16 %v387
        %v808 = vunpack.c.h.b16 %v387
        %v809 = vunpack.c.l.b16 %v388
        %v810 = vunpack.c.h.b16 %v388
        %v811 = vunpack.c.l.b16 %v389
        %v812 = vunpack.c.h.b16 %v389
        %v813 = vunpack.c.l.b16 %v390
        %v814 = vunpack.c.h.b16 %v390
        %v815 = vunpack.c.l.b16 %v391
        %v816 = vunpack.c.h.b16 %v391
        %v817 = vunpack.c.l.b16 %v392
        %v818 = vunpack.c.h.b16 %v392
        %v819 = vunpack.c.l.b16 %v393
        %v820 = vunpack.c.h.b16 %v393
        %v821 = vunpack.c.l.b16 %v394
        %v822 = vunpack.c.h.b16 %v394
        %v823 = vunpack.c.l.b16 %v395
        %v824 = vunpack.c.h.b16 %v395
        %v825 = vunpack.c.l.b16 %v396
        %v826 = vunpack.c.h.b16 %v396
        %v827 = vunpack.c.l.b16 %v397
        %v828 = vunpack.c.h.b16 %v397
        %v829 = vunpack.c.l.b16 %v398
        %v830 = vunpack.c.h.b16 %v398
        %v831 = vunpack.c.l.b16 %v399
        %v832 = vunpack.c.h.b16 %v399
        %v833 = vunpack.c.l.b16 %v400
        %v834 = vunpack.c.h.b16 %v400
        %v835 = vunpack.c.l.b16 %v401
        %v836 = vunpack.c.h.b16 %v401
        %v837 = vunpack.c.l.b16 %v402
        %v838 = vunpack.c.h.b16 %v402
        %v839 = vunpack.c.l.b16 %v403
        %v840 = vunpack.c.h.b16 %v403
        %v841 = vunpack.c.l.b16 %v404
        %v842 = vunpack.c.h.b16 %v404
        %v843 = vunpack.c.l.b16 %v405
        %v844 = vunpack.c.h.b16 %v405
        %v845 = vunpack.c.l.b16 %v406
        %v846 = vunpack.c.h.b16 %v406
        %v847 = vunpack.c.l.b16 %v407
        %v848 = vunpack.c.h.b16 %v407
        %v849 = vunpack.c.l.b16 %v408
        %v850 = vunpack.c.h.b16 %v408
        %v851 = vunpack.c.l.b16 %v409
        %v852 = vunpack.c.h.b16 %v409
        %v853 = vunpack.c.l.b16 %v410
        %v854 = vunpack.c.h.b16 %v410
        %v855 = vunpack.c.l.b16 %v411
        %v856 = vunpack.c.h.b16 %v411
        %v857 = vunpack.c.l.b16 %v412
        %v858 = vunpack.c.h.b16 %v412
        %v859 = vunpack.c.l.b16 %v413
        %v860 = vunpack.c.h.b16 %v413
        %v861 = vunpack.c.l.b16 %v414
        %v862 = vunpack.c.h.b16 %v414
        %v863 = vunpack.c.l.b16 %v415
        %v864 = vunpack.c.h.b16 %v415
        %v865 = vunpack.c.l.b16 %v416
        %v866 = vunpack.c.h.b16 %v416
        %v867 = vunpack.c.l.b16 %v417
        %v868 = vunpack.c.h.b16 %v417
        %v869 = vunpack.c.l.b16 %v418
        %v870 = vunpack.c.h.b16 %v418
        %v871 = vunpack.c.l.b16 %v419
        %v872 = vunpack.c.h.b16 %v419
        %v873 = vunpack.c.l.b16 %v420
        %v874 = vunpack.c.h.b16 %v420
        %v875 = vunpack.c.l.b16 %v421
        %v876 = vunpack.c.h.b16 %v421
        %v877 = vunpack.c.l.b16 %v422
        %v878 = vunpack.c.h.b16 %v422
        %v879 = vunpack.c.l.b16 %v423
        %v880 = vunpack.c.h.b16 %v423
        %v881 = vunpack.c.l.b16 %v424
        %v882 = vunpack.c.h.b16 %v424
        %v883 = vunpack.c.l.b16 %v425
        %v884 = vunpack.c.h.b16 %v425
        %v885 = vunpack.c.l.b16 %v426
        %v886 = vunpack.c.h.b16 %v426
        %v887 = vunpack.c.l.b16 %v427
        %v888 = vunpack.c.h.b16 %v427
        %v889 = vunpack.c.l.b16 %v428
        %v890 = vunpack.c.h.b16 %v428
        %v891 = vunpack.c.l.b16 %v429
        %v892 = vunpack.c.h.b16 %v429
        %v893 = vunpack.c.l.b16 %v430
        %v894 = vunpack.c.h.b16 %v430
        %v895 = vunpack.c.l.b16 %v431
        %v896 = vunpack.c.h.b16 %v431
        %v897 = vunpack.c.l.b16 %v432
        %v898 = vunpack.c.h.b16 %v432
        %v899 = vunpack.c.l.b16 %v433
        %v900 = vunpack.c.h.b16 %v433
        %v901 = vunpack.c.l.b16 %v434
        %v902 = vunpack.c.h.b16 %v434
        %v903 = vunpack.c.l.b16 %v435
        %v904 = vunpack.c.h.b16 %v435
        %v905 = vunpack.c.l.b16 %v436
        %v906 = vunpack.c.h.b16 %v436
        %v907 = vunpack.c.l.b16 %v437
        %v908 = vunpack.c.h.b16 %v437
        %v909 = vunpack.c.l.b16 %v438
        %v910 = vunpack.c.h.b16 %v438
        %v911 = vunpack.c.l.b16 %v439
        %v912 = vunpack.c.h.b16 %v439
        %v913 = vunpack.c.l.b16 %v440
        %v914 = vunpack.c.h.b16 %v440
        %v915 = vunpack.c.l.b16 %v441
        %v916 = vunpack.c.h.b16 %v441
        %v917 = vpack.c.b16 %v635, %v629
        %v918 = vpack.c.b16 %v636, %v630
        %v919 = vpack.c.b16 %v637, %v631
        %v920 = vpack.c.b16 %v638, %v632
        %v921 = vpack.c.b16 %v639, %v633
        %v922 = vpack.c.b16 %v640, %v634
        %v923 = vpack.c.b16 %v647, %v641
        %v924 = vpack.c.b16 %v648, %v642
        %v925 = vpack.c.b16 %v649, %v643
        %v926 = vpack.c.b16 %v650, %v644
        %v927 = vpack.c.b16 %v651, %v645
        %v928 = vpack.c.b16 %v652, %v646
        %v929 = vpack.c.b16 %v659, %v653
        %v930 = vpack.c.b16 %v660, %v654
        %v931 = vpack.c.b16 %v661, %v655
        %v932 = vpack.c.b16 %v662, %v656
        %v933 = vpack.c.b16 %v663, %v657
        %v934 = vpack.c.b16 %v664, %v658
        %v935 = vpack.c.b16 %v671, %v665
        %v936 = vpack.c.b16 %v672, %v666
        %v937 = vpack.c.b16 %v673, %v667
        %v938 = vpack.c.b16 %v674, %v668
        %v939 = vpack.c.b16 %v675, %v669
        %v940 = vpack.c.b16 %v676, %v670
        %v941 = vpack.c.b16 %v683, %v677
        %v942 = vpack.c.b16 %v684, %v678
        %v943 = vpack.c.b16 %v685, %v679
        %v944 = vpack.c.b16 %v686, %v680
        %v945 = vpack.c.b16 %v687, %v681
        %v946 = vpack.c.b16 %v688, %v682
        %v947 = vpack.c.b16 %v695, %v689
        %v948 = vpack.c.b16 %v696, %v690
        %v949 = vpack.c.b16 %v697, %v691
        %v950 = vpack.c.b16 %v698, %v692
        %v951 = vpack.c.b16 %v699, %v693
        %v952 = vpack.c.b16 %v700, %v694
        %v953 = vpack.c.b16 %v707, %v701
        %v954 = vpack.c.b16 %v708, %v702
        %v955 = vpack.c.b16 %v709, %v703
        %v956 = vpack.c.b16 %v710, %v704
        %v957 = vpack.c.b16 %v711, %v705
        %v958 = vpack.c.b16 %v712, %v706
        %v959 = vpack.c.b16 %v719, %v713
        %v960 = vpack.c.b16 %v720, %v714
        %v961 = vpack.c.b16 %v721, %v715
        %v962 = vpack.c.b16 %v722, %v716
        %v963 = vpack.c.b16 %v723, %v717
        %v964 = vpack.c.b16 %v724, %v718
        %v965 = vpack.c.b16 %v731, %v725
        %v966 = vpack.c.b16 %v732, %v726
        %v967 = vpack.c.b16 %v733, %v727
        %v968 = vpack.c.b16 %v734, %v728
        %v969 = vpack.c.b16 %v735, %v729
        %v970 = vpack.c.b16 %v736, %v730
        %v971 = vpack.c.b16 %v743, %v737
        %v972 = vpack.c.b16 %v744, %v738
        %v973 = vpack.c.b16 %v745, %v739
        %v974 = vpack.c.b16 %v746, %v740
        %v975 = vpack.c.b16 %v747, %v741
        %v976 = vpack.c.b16 %v748, %v742
        %v977 = vpack.c.b16 %v755, %v749
        %v978 = vpack.c.b16 %v756, %v750
        %v979 = vpack.c.b16 %v757, %v751
        %v980 = vpack.c.b16 %v758, %v752
        %v981 = vpack.c.b16 %v759, %v753
        %v982 = vpack.c.b16 %v760, %v754
        %v983 = vpack.c.b16 %v767, %v761
        %v984 = vpack.c.b16 %v768, %v762
        %v985 = vpack.c.b16 %v769, %v763
        %v986 = vpack.c.b16 %v770, %v764
        %v987 = vpack.c.b16 %v771, %v765
        %v988 = vpack.c.b16 %v772, %v766
        %v989 = vpack.c.b16 %v779, %v773
        %v990 = vpack.c.b16 %v780, %v774
        %v991 = vpack.c.b16 %v781, %v775
        %v992 = vpack.c.b16 %v782, %v776
        %v993 = vpack.c.b16 %v783, %v777
        %v994 = vpack.c.b16 %v784, %v778
        %v995 = vpack.c.b16 %v791, %v785
        %v996 = vpack.c.b16 %v792, %v786
        %v997 = vpack.c.b16 %v793, %v787
        %v998 = vpack.c.b16 %v794, %v788
        %v999 = vpack.c.b16 %v795, %v789
        %v1000 = vpack.c.b16 %v796, %v790
        %v1001 = vpack.c.b16 %v803, %v797
        %v1002 = vpack.c.b16 %v804, %v798
        %v1003 = vpack.c.b16 %v805, %v799
        %v1004 = vpack.c.b16 %v806, %v800
        %v1005 = vpack.c.b16 %v807, %v801
        %v1006 = vpack.c.b16 %v808, %v802
        %v1007 = vpack.c.b16 %v815, %v809
        %v1008 = vpack.c.b16 %v816, %v810
        %v1009 = vpack.c.b16 %v817, %v811
        %v1010 = vpack.c.b16 %v818, %v812
        %v1011 = vpack.c.b16 %v819, %v813
        %v1012 = vpack.c.b16 %v820, %v814
        %v1013 = vpack.c.b16 %v827, %v821
        %v1014 = vpack.c.b16 %v828, %v822
        %v1015 = vpack.c.b16 %v829, %v823
        %v1016 = vpack.c.b16 %v830, %v824
        %v1017 = vpack.c.b16 %v831, %v825
        %v1018 = vpack.c.b16 %v832, %v826
        %v1019 = vpack.c.b16 %v839, %v833
        %v1020 = vpack.c.b16 %v840, %v834
        %v1021 = vpack.c.b16 %v841, %v835
        %v1022 = vpack.c.b16 %v842, %v836
        %v1023 = vpack.c.b16 %v843, %v837
        %v1024 = vpack.c.b16 %v844, %v838
        %v1025 = vpack.c.b16 %v851, %v845
        %v1026 = vpack.c.b16 %v852, %v846
        %v1027 = vpack.c.b16 %v853, %v847
        %v1028 = vpack.c.b16 %v854, %v848
        %v1029 = vpack.c.b16 %v855, %v849
        %v1030 = vpack.c.b16 %v856, %v850
        %v1031 = vpack.c.b16 %v863, %v857
        %v1032 = vpack.c.b16 %v864, %v858
        %v1033 = vpack.c.b16 %v865, %v859
        %v1034 = vpack.c.b16 %v866, %v860
        %v1035 = vpack.c.b16 %v867, %v861
        %v1036 = vpack.c.b16 %v868, %v862
        %v1037 = vpack.c.b16 %v875, %v869
        %v1038 = vpack.c.b16 %v876, %v870
        %v1039 = vpack.c.b16 %v877, %v871
        %v1040 = vpack.c.b16 %v878, %v872
        %v1041 = vpack.c.b16 %v879, %v873
        %v1042 = vpack.c.b16 %v880, %v874
        %v1043 = vpack.c.b16 %v887, %v881
        %v1044 = vpack.c.b16 %v888, %v882
        %v1045 = vpack.c.b16 %v889, %v883
        %v1046 = vpack.c.b16 %v890, %v884
        %v1047 = vpack.c.b16 %v891, %v885
        %v1048 = vpack.c.b16 %v892, %v886
        %v1049 = vpack.c.b16 %v899, %v893
        %v1050 = vpack.c.b16 %v900, %v894
        %v1051 = vpack.c.b16 %v901, %v895
        %v1052 = vpack.c.b16 %v902, %v896
        %v1053 = vpack.c.b16 %v903, %v897
        %v1054 = vpack.c.b16 %v904, %v898
        %v1055 = vpack.c.b16 %v911, %v905
        %v1056 = vpack.c.b16 %v912, %v906
        %v1057 = vpack.c.b16 %v913, %v907
        %v1058 = vpack.c.b16 %v914, %v908
        %v1059 = vpack.c.b16 %v915, %v909
        %v1060 = vpack.c.b16 %v916, %v910
        %1205 = vmatprep.subr.bf16.mxu0 %v960
        %1206 = vmatpush1.bf16.msra.mxu0 %v959
        %1207 = vmatprep.subr.bf16.mxu0 %v954
        %1208 = vmatpush1.bf16.msra.mxu0 %v953
        %1209 = vmatprep.subr.bf16.mxu0 %v948
        %1210 = vmatpush1.bf16.msra.mxu0 %v947
        %1211 = vmatprep.subr.bf16.mxu0 %v942
        %1212 = vmatpush1.bf16.msra.mxu0 %v941
        %1213 = vmatprep.subr.bf16.mxu0 %v936
        %1214 = vmatpush1.bf16.msra.mxu0 %v935
        %1215 = vmatprep.subr.bf16.mxu0 %v930
        %1216 = vmatpush1.bf16.msra.mxu0 %v929
        %1217 = vmatprep.subr.bf16.mxu0 %v924
        %1218 = vmatpush1.bf16.msra.mxu0 %v923
        %1219 = vmatprep.subr.bf16.mxu0 %v918
        %1220 = vmatpush1.bf16.msra.mxu0 %v917
        %1221 = vmatprep.subr.bf16.mxu0 %v1008
        %1222 = vmatpush2.bf16.msra.mxu0 %v1007
        %1223 = vmatprep.subr.bf16.mxu0 %v1002
        %1224 = vmatpush2.bf16.msra.mxu0 %v1001
        %1225 = vmatprep.subr.bf16.mxu0 %v996
        %1226 = vmatpush2.bf16.msra.mxu0 %v995
        %1227 = vmatprep.subr.bf16.mxu0 %v990
        %1228 = vmatpush2.bf16.msra.mxu0 %v989
        %1229 = vmatprep.subr.bf16.mxu0 %v984
        %1230 = vmatpush2.bf16.msra.mxu0 %v983
        %1231 = vmatprep.subr.bf16.mxu0 %v978
        %1232 = vmatpush2.bf16.msra.mxu0 %v977
        %1233 = vmatprep.subr.bf16.mxu0 %v972
        %1234 = vmatpush2.bf16.msra.mxu0 %v971
        %1235 = vmatprep.subr.bf16.mxu0 %v966
        %1236 = vmatpush2.bf16.msra.mxu0 %v965
        %1237 = vmatprep.mubr.bf16.mxu0 %v480
        %1238 = vmatmul.mubr.bf16.gmra.mxu0 %v479
        %v1239 = vpop.f32.mrf.mxu0
        %v1240 = vadd.f32 %v447, %v1239
        %v1241 = vpop.f32.mrf.mxu0
        %v1242 = vadd.f32 %v451, %v1241
        %v1243 = vpop.f32.mrf.mxu0
        %v1244 = vpop.f32.mrf.mxu0
        %1245 = vdwg.mxu0
        %1246 = vmatprep.subr.bf16.mxu0 %v1056
        %1247 = vmatpush1.bf16.msra.mxu0 %v1055
        %1248 = vmatprep.subr.bf16.mxu0 %v1050
        %1249 = vmatpush1.bf16.msra.mxu0 %v1049
        %1250 = vmatprep.subr.bf16.mxu0 %v1044
        %1251 = vmatpush1.bf16.msra.mxu0 %v1043
        %1252 = vmatprep.subr.bf16.mxu0 %v1038
        %1253 = vmatpush1.bf16.msra.mxu0 %v1037
        %1254 = vmatprep.subr.bf16.mxu0 %v1032
        %1255 = vmatpush1.bf16.msra.mxu0 %v1031
        %1256 = vmatprep.subr.bf16.mxu0 %v1026
        %1257 = vmatpush1.bf16.msra.mxu0 %v1025
        %1258 = vmatprep.subr.bf16.mxu0 %v1020
        %1259 = vmatpush1.bf16.msra.mxu0 %v1019
        %1260 = vmatprep.subr.bf16.mxu0 %v1014
        %1261 = vmatpush1.bf16.msra.mxu0 %v1013
        %1262 = vmatprep.subr.bf16.mxu0 0
        %1263 = vmatpush2.bf16.msra.mxu0 0
        %1264 = vmatprep.subr.bf16.mxu0 0
        %1265 = vmatpush2.bf16.msra.mxu0 0
        %1266 = vmatprep.subr.bf16.mxu0 0
        %1267 = vmatpush2.bf16.msra.mxu0 0
        %1268 = vmatprep.subr.bf16.mxu0 0
        %1269 = vmatpush2.bf16.msra.mxu0 0
        %1270 = vmatprep.subr.bf16.mxu0 0
        %1271 = vmatpush2.bf16.msra.mxu0 0
        %1272 = vmatprep.subr.bf16.mxu0 0
        %1273 = vmatpush2.bf16.msra.mxu0 0
        %1274 = vmatprep.subr.bf16.mxu0 0
        %1275 = vmatpush2.bf16.msra.mxu0 0
        %1276 = vmatprep.subr.bf16.mxu0 0
        %1277 = vmatpush2.bf16.msra.mxu0 0
        %1278 = vmatprep.mubr.bf16.mxu0 0
        %1279 = vmatmul.mubr.bf16.gmra.mxu0 %v481
        %v1280 = vpop.f32.mrf.mxu0
        %v1281 = vadd.f32 %v1240, %v1280
        %v1282 = vpop.f32.mrf.mxu0
        %v1283 = vadd.f32 %v1242, %v1282
        %v1284 = vpop.f32.mrf.mxu0
        %v1285 = vpop.f32.mrf.mxu0
        %1286 = vdwg.mxu0
        %1287 = vmatprep.subr.bf16.mxu0 %v962
        %1288 = vmatpush1.bf16.msra.mxu0 %v961
        %1289 = vmatprep.subr.bf16.mxu0 %v956
        %1290 = vmatpush1.bf16.msra.mxu0 %v955
        %1291 = vmatprep.subr.bf16.mxu0 %v950
        %1292 = vmatpush1.bf16.msra.mxu0 %v949
        %1293 = vmatprep.subr.bf16.mxu0 %v944
        %1294 = vmatpush1.bf16.msra.mxu0 %v943
        %1295 = vmatprep.subr.bf16.mxu0 %v938
        %1296 = vmatpush1.bf16.msra.mxu0 %v937
        %1297 = vmatprep.subr.bf16.mxu0 %v932
        %1298 = vmatpush1.bf16.msra.mxu0 %v931
        %1299 = vmatprep.subr.bf16.mxu0 %v926
        %1300 = vmatpush1.bf16.msra.mxu0 %v925
        %1301 = vmatprep.subr.bf16.mxu0 %v920
        %1302 = vmatpush1.bf16.msra.mxu0 %v919
        %1303 = vmatprep.subr.bf16.mxu0 %v1010
        %1304 = vmatpush2.bf16.msra.mxu0 %v1009
        %1305 = vmatprep.subr.bf16.mxu0 %v1004
        %1306 = vmatpush2.bf16.msra.mxu0 %v1003
        %1307 = vmatprep.subr.bf16.mxu0 %v998
        %1308 = vmatpush2.bf16.msra.mxu0 %v997
        %1309 = vmatprep.subr.bf16.mxu0 %v992
        %1310 = vmatpush2.bf16.msra.mxu0 %v991
        %1311 = vmatprep.subr.bf16.mxu0 %v986
        %1312 = vmatpush2.bf16.msra.mxu0 %v985
        %1313 = vmatprep.subr.bf16.mxu0 %v980
        %1314 = vmatpush2.bf16.msra.mxu0 %v979
        %1315 = vmatprep.subr.bf16.mxu0 %v974
        %1316 = vmatpush2.bf16.msra.mxu0 %v973
        %1317 = vmatprep.subr.bf16.mxu0 %v968
        %1318 = vmatpush2.bf16.msra.mxu0 %v967
        %1319 = vmatprep.mubr.bf16.mxu0 %v480
        %1320 = vmatmul.mubr.bf16.gmra.mxu0 %v479
        %v1321 = vpop.f32.mrf.mxu0
        %v1322 = vadd.f32 %v455, %v1321
        %v1323 = vpop.f32.mrf.mxu0
        %v1324 = vadd.f32 %v459, %v1323
        %v1325 = vpop.f32.mrf.mxu0
        %v1326 = vpop.f32.mrf.mxu0
        %1327 = vdwg.mxu0
        %1328 = vmatprep.subr.bf16.mxu0 %v1058
        %1329 = vmatpush1.bf16.msra.mxu0 %v1057
        %1330 = vmatprep.subr.bf16.mxu0 %v1052
        %1331 = vmatpush1.bf16.msra.mxu0 %v1051
        %1332 = vmatprep.subr.bf16.mxu0 %v1046
        %1333 = vmatpush1.bf16.msra.mxu0 %v1045
        %1334 = vmatprep.subr.bf16.mxu0 %v1040
        %1335 = vmatpush1.bf16.msra.mxu0 %v1039
        %1336 = vmatprep.subr.bf16.mxu0 %v1034
        %1337 = vmatpush1.bf16.msra.mxu0 %v1033
        %1338 = vmatprep.subr.bf16.mxu0 %v1028
        %1339 = vmatpush1.bf16.msra.mxu0 %v1027
        %1340 = vmatprep.subr.bf16.mxu0 %v1022
        %1341 = vmatpush1.bf16.msra.mxu0 %v1021
        %1342 = vmatprep.subr.bf16.mxu0 %v1016
        %1343 = vmatpush1.bf16.msra.mxu0 %v1015
        %1344 = vmatprep.subr.bf16.mxu0 0
        %1345 = vmatpush2.bf16.msra.mxu0 0
        %1346 = vmatprep.subr.bf16.mxu0 0
        %1347 = vmatpush2.bf16.msra.mxu0 0
        %1348 = vmatprep.subr.bf16.mxu0 0
        %1349 = vmatpush2.bf16.msra.mxu0 0
        %1350 = vmatprep.subr.bf16.mxu0 0
        %1351 = vmatpush2.bf16.msra.mxu0 0
        %1352 = vmatprep.subr.bf16.mxu0 0
        %1353 = vmatpush2.bf16.msra.mxu0 0
        %1354 = vmatprep.subr.bf16.mxu0 0
        %1355 = vmatpush2.bf16.msra.mxu0 0
        %1356 = vmatprep.subr.bf16.mxu0 0
        %1357 = vmatpush2.bf16.msra.mxu0 0
        %1358 = vmatprep.subr.bf16.mxu0 0
        %1359 = vmatpush2.bf16.msra.mxu0 0
        %1360 = vmatprep.mubr.bf16.mxu0 0
        %1361 = vmatmul.mubr.bf16.gmra.mxu0 %v481
        %v1362 = vpop.f32.mrf.mxu0
        %v1363 = vadd.f32 %v1322, %v1362
        %v1364 = vpop.f32.mrf.mxu0
        %v1365 = vadd.f32 %v1324, %v1364
        %v1366 = vpop.f32.mrf.mxu0
        %v1367 = vpop.f32.mrf.mxu0
        %1368 = vdwg.mxu0
        %1369 = vmatprep.subr.bf16.mxu0 %v964
        %1370 = vmatpush1.bf16.msra.mxu0 %v963
        %1371 = vmatprep.subr.bf16.mxu0 %v958
        %1372 = vmatpush1.bf16.msra.mxu0 %v957
        %1373 = vmatprep.subr.bf16.mxu0 %v952
        %1374 = vmatpush1.bf16.msra.mxu0 %v951
        %1375 = vmatprep.subr.bf16.mxu0 %v946
        %1376 = vmatpush1.bf16.msra.mxu0 %v945
        %1377 = vmatprep.subr.bf16.mxu0 %v940
        %1378 = vmatpush1.bf16.msra.mxu0 %v939
        %1379 = vmatprep.subr.bf16.mxu0 %v934
        %1380 = vmatpush1.bf16.msra.mxu0 %v933
        %1381 = vmatprep.subr.bf16.mxu0 %v928
        %1382 = vmatpush1.bf16.msra.mxu0 %v927
        %1383 = vmatprep.subr.bf16.mxu0 %v922
        %1384 = vmatpush1.bf16.msra.mxu0 %v921
        %1385 = vmatprep.subr.bf16.mxu0 %v1012
        %1386 = vmatpush2.bf16.msra.mxu0 %v1011
        %1387 = vmatprep.subr.bf16.mxu0 %v1006
        %1388 = vmatpush2.bf16.msra.mxu0 %v1005
        %1389 = vmatprep.subr.bf16.mxu0 %v1000
        %1390 = vmatpush2.bf16.msra.mxu0 %v999
        %1391 = vmatprep.subr.bf16.mxu0 %v994
        %1392 = vmatpush2.bf16.msra.mxu0 %v993
        %1393 = vmatprep.subr.bf16.mxu0 %v988
        %1394 = vmatpush2.bf16.msra.mxu0 %v987
        %1395 = vmatprep.subr.bf16.mxu0 %v982
        %1396 = vmatpush2.bf16.msra.mxu0 %v981
        %1397 = vmatprep.subr.bf16.mxu0 %v976
        %1398 = vmatpush2.bf16.msra.mxu0 %v975
        %1399 = vmatprep.subr.bf16.mxu0 %v970
        %1400 = vmatpush2.bf16.msra.mxu0 %v969
        %1401 = vmatprep.mubr.bf16.mxu0 %v480
        %1402 = vmatmul.mubr.bf16.gmra.mxu0 %v479
        %v1403 = vpop.f32.mrf.mxu0
        %v1404 = vadd.f32 %v463, %v1403
        %v1405 = vpop.f32.mrf.mxu0
        %v1406 = vadd.f32 %v467, %v1405
        %v1407 = vpop.f32.mrf.mxu0
        %v1408 = vpop.f32.mrf.mxu0
        %1409 = vdwg.mxu0
        %1410 = vmatprep.subr.bf16.mxu0 %v1060
        %1411 = vmatpush1.bf16.msra.mxu0 %v1059
        %1412 = vmatprep.subr.bf16.mxu0 %v1054
        %1413 = vmatpush1.bf16.msra.mxu0 %v1053
        %1414 = vmatprep.subr.bf16.mxu0 %v1048
        %1415 = vmatpush1.bf16.msra.mxu0 %v1047
        %1416 = vmatprep.subr.bf16.mxu0 %v1042
        %1417 = vmatpush1.bf16.msra.mxu0 %v1041
        %1418 = vmatprep.subr.bf16.mxu0 %v1036
        %1419 = vmatpush1.bf16.msra.mxu0 %v1035
        %1420 = vmatprep.subr.bf16.mxu0 %v1030
        %1421 = vmatpush1.bf16.msra.mxu0 %v1029
        %1422 = vmatprep.subr.bf16.mxu0 %v1024
        %1423 = vmatpush1.bf16.msra.mxu0 %v1023
        %1424 = vmatprep.subr.bf16.mxu0 %v1018
        %1425 = vmatpush1.bf16.msra.mxu0 %v1017
        %1426 = vmatprep.subr.bf16.mxu0 0
        %1427 = vmatpush2.bf16.msra.mxu0 0
        %1428 = vmatprep.subr.bf16.mxu0 0
        %1429 = vmatpush2.bf16.msra.mxu0 0
        %1430 = vmatprep.subr.bf16.mxu0 0
        %1431 = vmatpush2.bf16.msra.mxu0 0
        %1432 = vmatprep.subr.bf16.mxu0 0
        %1433 = vmatpush2.bf16.msra.mxu0 0
        %1434 = vmatprep.subr.bf16.mxu0 0
        %1435 = vmatpush2.bf16.msra.mxu0 0
        %1436 = vmatprep.subr.bf16.mxu0 0
        %1437 = vmatpush2.bf16.msra.mxu0 0
        %1438 = vmatprep.subr.bf16.mxu0 0
        %1439 = vmatpush2.bf16.msra.mxu0 0
        %1440 = vmatprep.subr.bf16.mxu0 0
        %1441 = vmatpush2.bf16.msra.mxu0 0
        %1442 = vmatprep.mubr.bf16.mxu0 0
        %1443 = vmatmul.mubr.bf16.gmra.mxu0 %v481
        %v1444 = vpop.f32.mrf.mxu0
        %v1445 = vadd.f32 %v1404, %v1444
        %v1446 = vpop.f32.mrf.mxu0
        %v1447 = vadd.f32 %v1406, %v1446
        %v1448 = vpop.f32.mrf.mxu0
        %v1449 = vpop.f32.mrf.mxu0
        %1450 = vdwg.mxu0
        %v1451 = vmul.f32 %v1281, %v1281
        %v1452 = vmul.f32 %v1283, %v1283
        %v1453 = vmul.f32 %v1363, %v1363
        %v1454 = vmul.f32 %v1365, %v1365
        %v1455 = vmul.f32 %v1445, %v1445
        %v1456 = vmul.f32 %v1447, %v1447
        %v1457 = vmul.f32 %v1281, %v1451
        %v1458 = vmul.f32 %v1283, %v1452
        %v1459 = vmul.f32 %v1363, %v1453
        %v1460 = vmul.f32 %v1365, %v1454
        %v1461 = vmul.f32 %v1445, %v1455
        %v1462 = vmul.f32 %v1447, %v1456
        %v1463 = vmul.f32 %v1457, 0.044715
        %v1464 = vmul.f32 %v1458, 0.044715
        %v1465 = vmul.f32 %v1459, 0.044715
        %v1466 = vmul.f32 %v1460, 0.044715
        %v1467 = vmul.f32 %v1461, 0.044715
        %v1468 = vmul.f32 %v1462, 0.044715
        %v1469 = vadd.f32 %v1281, %v1463
        %v1470 = vadd.f32 %v1283, %v1464
        %v1471 = vadd.f32 %v1363, %v1465
        %v1472 = vadd.f32 %v1365, %v1466
        %v1473 = vadd.f32 %v1445, %v1467
        %v1474 = vadd.f32 %v1447, %v1468
        %v1475 = vmul.f32 %v1469, 0.7978846
        %v1476 = vmul.f32 %v1470, 0.7978846
        %v1477 = vmul.f32 %v1471, 0.7978846
        %v1478 = vmul.f32 %v1472, 0.7978846
        %v1479 = vmul.f32 %v1473, 0.7978846
        %v1480 = vmul.f32 %v1474, 0.7978846
        %v1481 = vtanh.pop %v1475
        %v1482 = vtanh.pop %v1476
        %v1483 = vtanh.pop %v1477
        %v1484 = vtanh.pop %v1478
        %v1485 = vtanh.pop %v1479
        %v1486 = vtanh.pop %v1480
        %v1487 = vadd.f32 %v1481, 1.0
        %v1488 = vadd.f32 %v1482, 1.0
        %v1489 = vadd.f32 %v1483, 1.0
        %v1490 = vadd.f32 %v1484, 1.0
        %v1491 = vadd.f32 %v1485, 1.0
        %v1492 = vadd.f32 %v1486, 1.0
        %v1493 = vmul.f32 %v1487, 0.5
        %v1494 = vmul.f32 %v1488, 0.5
        %v1495 = vmul.f32 %v1489, 0.5
        %v1496 = vmul.f32 %v1490, 0.5
        %v1497 = vmul.f32 %v1491, 0.5
        %v1498 = vmul.f32 %v1492, 0.5
        %v1499 = vmul.f32 %v1281, %v1493
        %v1500 = vmul.f32 %v1283, %v1494
        %v1501 = vmul.f32 %v1363, %v1495
        %v1502 = vmul.f32 %v1365, %v1496
        %v1503 = vmul.f32 %v1445, %v1497
        %v1504 = vmul.f32 %v1447, %v1498
        %v1505 = vld [vmem:[%s285] sm:$0x3f]
        %v1506 = vrot.slane %v1499, 4
        %v1507 = vadd.f32 %v1499, %v1506
        %v1508 = vrot.slane %v1507, 2
        %v1509 = vadd.f32 %v1507, %v1508
        %v1510 = vrot.slane %v1509, 1
        %v1511 = vadd.f32 %v1509, %v1510
        %v1512 = vrot.slane %v1500, 4
        %v1513 = vadd.f32 %v1500, %v1512
        %v1514 = vrot.slane %v1513, 2
        %v1515 = vadd.f32 %v1513, %v1514
        %v1516 = vrot.slane %v1515, 1
        %v1517 = vadd.f32 %v1515, %v1516
        %v1518 = vrot.slane %v1501, 4
        %v1519 = vadd.f32 %v1501, %v1518
        %v1520 = vrot.slane %v1519, 2
        %v1521 = vadd.f32 %v1519, %v1520
        %v1522 = vrot.slane %v1521, 1
        %v1523 = vadd.f32 %v1521, %v1522
        %v1524 = vrot.slane %v1502, 4
        %v1525 = vadd.f32 %v1502, %v1524
        %v1526 = vrot.slane %v1525, 2
        %v1527 = vadd.f32 %v1525, %v1526
        %v1528 = vrot.slane %v1527, 1
        %v1529 = vadd.f32 %v1527, %v1528
        %v1530 = vrot.slane %v1503, 4
        %v1531 = vadd.f32 %v1503, %v1530
        %v1532 = vrot.slane %v1531, 2
        %v1533 = vadd.f32 %v1531, %v1532
        %v1534 = vrot.slane %v1533, 1
        %v1535 = vadd.f32 %v1533, %v1534
        %v1536 = vrot.slane %v1504, 4
        %v1537 = vadd.f32 %v1504, %v1536
        %v1538 = vrot.slane %v1537, 2
        %v1539 = vadd.f32 %v1537, %v1538
        %v1540 = vrot.slane %v1539, 1
        %v1541 = vadd.f32 %v1539, %v1540
        %v1548 = vcombine.low %v1511, %v1517
        %v1549 = vcombine.low %v1523, %v1529
        %v1550 = vcombine.low %v1535, %v1541
        %v1552 = vunpack.c.l.s4 1966171168
        %v1553 = vunpack.c.0.s8 %v1552
        %v1554 = vlaneseq
        %v1555 = vshrl.u32 %v1554, 7
        %v1556 = vsub.s32 %v1553, %v1555
        %v1557 = vrot.slane %v1548, %v1556
        %v1559 = vunpack.c.l.s4 1966171168
        %v1560 = vunpack.c.0.s8 %v1559
        %v1561 = vlaneseq
        %v1562 = vshrl.u32 %v1561, 7
        %v1563 = vsub.s32 %v1560, %v1562
        %v1564 = vrot.slane %v1549, %v1563
        %v1566 = vunpack.c.l.s4 1966171168
        %v1567 = vunpack.c.0.s8 %v1566
        %v1568 = vlaneseq
        %v1569 = vshrl.u32 %v1568, 7
        %v1570 = vsub.s32 %v1567, %v1569
        %v1571 = vrot.slane %v1550, %v1570
        %v1572 = vcombine.low %v1557, %v1564
        %v1574 = vunpack.c.l.s4 1966171168
        %v1575 = vunpack.c.0.s8 %v1574
        %v1576 = vlaneseq
        %v1577 = vshrl.u32 %v1576, 7
        %v1578 = vsub.s32 %v1575, %v1577
        %v1579 = vrot.slane %v1572, %v1578
        %v1581 = vunpack.c.l.s4 1966171168
        %v1582 = vunpack.c.0.s8 %v1581
        %v1583 = vlaneseq
        %v1584 = vshrl.u32 %v1583, 7
        %v1585 = vsub.s32 %v1582, %v1584
        %v1586 = vrot.slane %v1571, %v1585
        %v1587 = vcombine.low %v1579, %v1586
        %v1589 = vadd.f32 %v1505, %v1587
        %v1590 = vlaneseq
        %vm1591 = vcmp.ge.s32.totalorder %v1590, 0
        %vm1592 = vcmp.lt.s32.totalorder %v1590, 768
        %vm1593 = vmand %vm1591, %vm1592
        %1594 = vst.msk [vmem:[%s285] sm:$0x3f] %vm1593, %v1589
        // Predicated region
        $region45: #{aves_classifier_forward.1} parent=39 // pred_check
          %p1595 = pneg %p287
        $region46: #{aves_classifier_forward.1} parent=39 // pred_check_branch
          %1597 = sbr.rel (%p1595) target = $region48
        $region47: #{aves_classifier_forward.1} parent=39 // pred_region
          %v1598 = vld [vmem:[%s285] sm:$0x3f]
          %v1599 = vmul.f32 %v1598, 0.125
          %1600 = vst.msk [vmem:[%s285] sm:$0x3f] %vm1593, %v1599
          %v1601 = vld [vmem:[%s3] sm:$0xff]
          %v1602 = vld [vmem:[%s3 + $0x8] sm:$0xff]
          %v1603 = vld [vmem:[%s3 + $0x10] sm:$0xff]
          %v1604 = vld [vmem:[%s3 + $0x18] sm:$0xff]
          %v1605 = vld [vmem:[%s3 + $0x20] sm:$0xff]
          %v1606 = vld [vmem:[%s3 + $0x28] sm:$0xff]
          %v1607 = vld [vmem:[%s3 + $0x30] sm:$0xff]
          %v1608 = vld [vmem:[%s3 + $0x38] sm:$0xff]
          %v1609 = vld [vmem:[%s3 + $0x40] sm:$0xff]
          %v1610 = vld [vmem:[%s3 + $0x48] sm:$0xff]
          %v1611 = vld [vmem:[%s3 + $0x50] sm:$0xff]
          %v1612 = vld [vmem:[%s3 + $0x58] sm:$0xff]
          %v1613 = vld [vmem:[%s3 + $0x60] sm:$0xff]
          %v1614 = vld [vmem:[%s3 + $0x68] sm:$0xff]
          %v1615 = vld [vmem:[%s3 + $0x70] sm:$0xff]
          %v1616 = vld [vmem:[%s3 + $0x78] sm:$0xff]
          %v1617 = vld [vmem:[%s3 + $0x80] sm:$0xff]
          %v1618 = vld [vmem:[%s3 + $0x88] sm:$0xff]
          %v1619 = vld [vmem:[%s3 + $0x90] sm:$0xff]
          %v1620 = vld [vmem:[%s3 + $0x98] sm:$0xff]
          %v1621 = vld [vmem:[%s3 + $0xa0] sm:$0xff]
          %v1622 = vld [vmem:[%s3 + $0xa8] sm:$0xff]
          %v1623 = vld [vmem:[%s3 + $0xb0] sm:$0xff]
          %v1624 = vld [vmem:[%s3 + $0xb8] sm:$0xff]
          %v1625 = vld [vmem:[%s3 + $0xc0] sm:$0xff]
          %v1626 = vld [vmem:[%s3 + $0xc8] sm:$0xff]
          %v1627 = vld [vmem:[%s3 + $0xd0] sm:$0xff]
          %v1628 = vld [vmem:[%s3 + $0xd8] sm:$0xff]
          %v1629 = vld [vmem:[%s3 + $0xe0] sm:$0xff]
          %v1630 = vld [vmem:[%s3 + $0xe8] sm:$0xff]
          %v1631 = vld [vmem:[%s3 + $0xf0] sm:$0xff]
          %v1632 = vld [vmem:[%s3 + $0xf8] sm:$0xff]
          %v1633 = vld [vmem:[%s3 + $0x100] sm:$0xff]
          %v1634 = vld [vmem:[%s3 + $0x108] sm:$0xff]
          %v1635 = vld [vmem:[%s3 + $0x110] sm:$0xff]
          %v1636 = vld [vmem:[%s3 + $0x118] sm:$0xff]
          %v1637 = vld [vmem:[%s3 + $0x120] sm:$0xff]
          %v1638 = vld [vmem:[%s3 + $0x128] sm:$0xff]
          %v1639 = vld [vmem:[%s3 + $0x130] sm:$0xff]
          %v1640 = vld [vmem:[%s3 + $0x138] sm:$0xff]
          %v1641 = vld [vmem:[%s3 + $0x140] sm:$0xff]
          %v1642 = vld [vmem:[%s3 + $0x148] sm:$0xff]
          %v1643 = vld [vmem:[%s3 + $0x150] sm:$0xff]
          %v1644 = vld [vmem:[%s3 + $0x158] sm:$0xff]
          %v1645 = vld [vmem:[%s3 + $0x160] sm:$0xff]
          %v1646 = vld [vmem:[%s3 + $0x168] sm:$0xff]
          %v1647 = vld [vmem:[%s3 + $0x170] sm:$0xff]
          %v1648 = vld [vmem:[%s3 + $0x178] sm:$0xff]
          %v1649 = vld [vmem:[%s3 + $0x180] sm:$0xff]
          %v1650 = vld [vmem:[%s3 + $0x188] sm:$0xff]
          %v1651 = vld [vmem:[%s3 + $0x190] sm:$0xff]
          %v1652 = vld [vmem:[%s3 + $0x198] sm:$0xff]
          %v1653 = vld [vmem:[%s3 + $0x1a0] sm:$0xff]
          %v1654 = vld [vmem:[%s3 + $0x1a8] sm:$0xff]
          %v1655 = vld [vmem:[%s3 + $0x1b0] sm:$0xff]
          %v1656 = vld [vmem:[%s3 + $0x1b8] sm:$0xff]
          %v1657 = vld [vmem:[%s3 + $0x1c0] sm:$0xff]
          %v1658 = vld [vmem:[%s3 + $0x1c8] sm:$0xff]
          %v1659 = vld [vmem:[%s3 + $0x1d0] sm:$0xff]
          %v1660 = vld [vmem:[%s3 + $0x1d8] sm:$0xff]
          %v1661 = vld [vmem:[%s3 + $0x1e0] sm:$0xff]
          %v1662 = vld [vmem:[%s3 + $0x1e8] sm:$0xff]
          %v1663 = vld [vmem:[%s3 + $0x1f0] sm:$0xff]
          %v1664 = vld [vmem:[%s3 + $0x1f8] sm:$0xff]
          %v1665 = vld [vmem:[%s3 + $0x200] sm:$0xff]
          %v1666 = vld [vmem:[%s3 + $0x208] sm:$0xff]
          %v1667 = vld [vmem:[%s3 + $0x210] sm:$0xff]
          %v1668 = vld [vmem:[%s3 + $0x218] sm:$0xff]
          %v1669 = vld [vmem:[%s3 + $0x220] sm:$0xff]
          %v1670 = vld [vmem:[%s3 + $0x228] sm:$0xff]
          %v1671 = vld [vmem:[%s3 + $0x230] sm:$0xff]
          %v1672 = vld [vmem:[%s3 + $0x238] sm:$0xff]
          %v1673 = vld [vmem:[%s3 + $0x240] sm:$0xff]
          %v1674 = vld [vmem:[%s3 + $0x248] sm:$0xff]
          %v1675 = vld [vmem:[%s3 + $0x250] sm:$0xff]
          %v1676 = vld [vmem:[%s3 + $0x258] sm:$0xff]
          %v1677 = vld [vmem:[%s3 + $0x260] sm:$0xff]
          %v1678 = vld [vmem:[%s3 + $0x268] sm:$0xff]
          %v1679 = vld [vmem:[%s3 + $0x270] sm:$0xff]
          %v1680 = vld [vmem:[%s3 + $0x278] sm:$0xff]
          %v1681 = vld [vmem:[%s3 + $0x280] sm:$0xff]
          %v1682 = vld [vmem:[%s3 + $0x288] sm:$0xff]
          %v1683 = vld [vmem:[%s3 + $0x290] sm:$0xff]
          %v1684 = vld [vmem:[%s3 + $0x298] sm:$0xff]
          %v1685 = vld [vmem:[%s3 + $0x2a0] sm:$0xff]
          %v1686 = vld [vmem:[%s3 + $0x2a8] sm:$0xff]
          %v1687 = vld [vmem:[%s3 + $0x2b0] sm:$0xff]
          %v1688 = vld [vmem:[%s3 + $0x2b8] sm:$0xff]
          %v1689 = vld [vmem:[%s3 + $0x2c0] sm:$0xff]
          %v1690 = vld [vmem:[%s3 + $0x2c8] sm:$0xff]
          %v1691 = vld [vmem:[%s3 + $0x2d0] sm:$0xff]
          %v1692 = vld [vmem:[%s3 + $0x2d8] sm:$0xff]
          %v1693 = vld [vmem:[%s3 + $0x2e0] sm:$0xff]
          %v1694 = vld [vmem:[%s3 + $0x2e8] sm:$0xff]
          %v1695 = vld [vmem:[%s3 + $0x2f0] sm:$0xff]
          %v1696 = vld [vmem:[%s3 + $0x2f8] sm:$0xff]
          %v1697 = vld [vmem:[%s4] sm:$0x1]
          %v1699 = vlaneseq
          %v1700 = vshrl.u32 %v1699, 7
          %v1701 = vsub.s32 0, %v1700
          %v1702 = vrot.slane %v1599, %v1701
          %v1703 = vlaneseq
          %v1704 = vshrl.u32 %v1703, 7
          %v1705 = vsub.s32 1, %v1704
          %v1706 = vrot.slane %v1599, %v1705
          %v1707 = vlaneseq
          %v1708 = vshrl.u32 %v1707, 7
          %v1709 = vsub.s32 2, %v1708
          %v1710 = vrot.slane %v1599, %v1709
          %v1711 = vlaneseq
          %v1712 = vshrl.u32 %v1711, 7
          %v1713 = vsub.s32 3, %v1712
          %v1714 = vrot.slane %v1599, %v1713
          %v1715 = vlaneseq
          %v1716 = vshrl.u32 %v1715, 7
          %v1717 = vsub.s32 4, %v1716
          %v1718 = vrot.slane %v1599, %v1717
          %v1719 = vlaneseq
          %v1720 = vshrl.u32 %v1719, 7
          %v1721 = vsub.s32 5, %v1720
          %v1722 = vrot.slane %v1599, %v1721
          %1729 = vmatprep.subr.mxu0 0.0
          %1730 = vmatpush1.msra.mxu0 %v1616
          %1731 = vmatprep.subr.mxu0 0.0
          %1732 = vmatpush1.msra.mxu0 %v1615
          %1733 = vmatprep.subr.mxu0 0.0
          %1734 = vmatpush1.msra.mxu0 %v1614
          %1735 = vmatprep.subr.mxu0 0.0
          %1736 = vmatpush1.msra.mxu0 %v1613
          %1737 = vmatprep.subr.mxu0 0.0
          %1738 = vmatpush1.msra.mxu0 %v1612
          %1739 = vmatprep.subr.mxu0 0.0
          %1740 = vmatpush1.msra.mxu0 %v1611
          %1741 = vmatprep.subr.mxu0 0.0
          %1742 = vmatpush1.msra.mxu0 %v1610
          %1743 = vmatprep.subr.mxu0 0.0
          %1744 = vmatpush1.msra.mxu0 %v1609
          %1745 = vmatprep.subr.mxu0 0.0
          %1746 = vmatpush1.msra.mxu0 %v1608
          %1747 = vmatprep.subr.mxu0 0.0
          %1748 = vmatpush1.msra.mxu0 %v1607
          %1749 = vmatprep.subr.mxu0 0.0
          %1750 = vmatpush1.msra.mxu0 %v1606
          %1751 = vmatprep.subr.mxu0 0.0
          %1752 = vmatpush1.msra.mxu0 %v1605
          %1753 = vmatprep.subr.mxu0 0.0
          %1754 = vmatpush1.msra.mxu0 %v1604
          %1755 = vmatprep.subr.mxu0 0.0
          %1756 = vmatpush1.msra.mxu0 %v1603
          %1757 = vmatprep.subr.mxu0 0.0
          %1758 = vmatpush1.msra.mxu0 %v1602
          %1759 = vmatprep.subr.mxu0 0.0
          %1760 = vmatpush1.msra.mxu0 %v1601
          %1761 = vmatprep.subr.mxu0 0.0
          %1762 = vmatpush2.msra.mxu0 %v1632
          %1763 = vmatprep.subr.mxu0 0.0
          %1764 = vmatpush2.msra.mxu0 %v1631
          %1765 = vmatprep.subr.mxu0 0.0
          %1766 = vmatpush2.msra.mxu0 %v1630
          %1767 = vmatprep.subr.mxu0 0.0
          %1768 = vmatpush2.msra.mxu0 %v1629
          %1769 = vmatprep.subr.mxu0 0.0
          %1770 = vmatpush2.msra.mxu0 %v1628
          %1771 = vmatprep.subr.mxu0 0.0
          %1772 = vmatpush2.msra.mxu0 %v1627
          %1773 = vmatprep.subr.mxu0 0.0
          %1774 = vmatpush2.msra.mxu0 %v1626
          %1775 = vmatprep.subr.mxu0 0.0
          %1776 = vmatpush2.msra.mxu0 %v1625
          %1777 = vmatprep.subr.mxu0 0.0
          %1778 = vmatpush2.msra.mxu0 %v1624
          %1779 = vmatprep.subr.mxu0 0.0
          %1780 = vmatpush2.msra.mxu0 %v1623
          %1781 = vmatprep.subr.mxu0 0.0
          %1782 = vmatpush2.msra.mxu0 %v1622
          %1783 = vmatprep.subr.mxu0 0.0
          %1784 = vmatpush2.msra.mxu0 %v1621
          %1785 = vmatprep.subr.mxu0 0.0
          %1786 = vmatpush2.msra.mxu0 %v1620
          %1787 = vmatprep.subr.mxu0 0.0
          %1788 = vmatpush2.msra.mxu0 %v1619
          %1789 = vmatprep.subr.mxu0 0.0
          %1790 = vmatpush2.msra.mxu0 %v1618
          %1791 = vmatprep.subr.mxu0 0.0
          %1792 = vmatpush2.msra.mxu0 %v1617
          %1793 = vmatprep.mubr.f32.mxu0 %v1706
          %1794 = vmatmul.mubr.f32.gmra.mxu0 %v1702
          %v1795 = vpop.f32.mrf.mxu0
          %v1796 = vadd.f32 %v1697, %v1795
          %v1797 = vpop.f32.mrf.mxu0
          %1798 = vdwg.mxu0
          %1799 = vmatprep.subr.mxu0 0.0
          %1800 = vmatpush1.msra.mxu0 %v1648
          %1801 = vmatprep.subr.mxu0 0.0
          %1802 = vmatpush1.msra.mxu0 %v1647
          %1803 = vmatprep.subr.mxu0 0.0
          %1804 = vmatpush1.msra.mxu0 %v1646
          %1805 = vmatprep.subr.mxu0 0.0
          %1806 = vmatpush1.msra.mxu0 %v1645
          %1807 = vmatprep.subr.mxu0 0.0
          %1808 = vmatpush1.msra.mxu0 %v1644
          %1809 = vmatprep.subr.mxu0 0.0
          %1810 = vmatpush1.msra.mxu0 %v1643
          %1811 = vmatprep.subr.mxu0 0.0
          %1812 = vmatpush1.msra.mxu0 %v1642
          %1813 = vmatprep.subr.mxu0 0.0
          %1814 = vmatpush1.msra.mxu0 %v1641
          %1815 = vmatprep.subr.mxu0 0.0
          %1816 = vmatpush1.msra.mxu0 %v1640
          %1817 = vmatprep.subr.mxu0 0.0
          %1818 = vmatpush1.msra.mxu0 %v1639
          %1819 = vmatprep.subr.mxu0 0.0
          %1820 = vmatpush1.msra.mxu0 %v1638
          %1821 = vmatprep.subr.mxu0 0.0
          %1822 = vmatpush1.msra.mxu0 %v1637
          %1823 = vmatprep.subr.mxu0 0.0
          %1824 = vmatpush1.msra.mxu0 %v1636
          %1825 = vmatprep.subr.mxu0 0.0
          %1826 = vmatpush1.msra.mxu0 %v1635
          %1827 = vmatprep.subr.mxu0 0.0
          %1828 = vmatpush1.msra.mxu0 %v1634
          %1829 = vmatprep.subr.mxu0 0.0
          %1830 = vmatpush1.msra.mxu0 %v1633
          %1831 = vmatprep.subr.mxu0 0.0
          %1832 = vmatpush2.msra.mxu0 %v1664
          %1833 = vmatprep.subr.mxu0 0.0
          %1834 = vmatpush2.msra.mxu0 %v1663
          %1835 = vmatprep.subr.mxu0 0.0
          %1836 = vmatpush2.msra.mxu0 %v1662
          %1837 = vmatprep.subr.mxu0 0.0
          %1838 = vmatpush2.msra.mxu0 %v1661
          %1839 = vmatprep.subr.mxu0 0.0
          %1840 = vmatpush2.msra.mxu0 %v1660
          %1841 = vmatprep.subr.mxu0 0.0
          %1842 = vmatpush2.msra.mxu0 %v1659
          %1843 = vmatprep.subr.mxu0 0.0
          %1844 = vmatpush2.msra.mxu0 %v1658
          %1845 = vmatprep.subr.mxu0 0.0
          %1846 = vmatpush2.msra.mxu0 %v1657
          %1847 = vmatprep.subr.mxu0 0.0
          %1848 = vmatpush2.msra.mxu0 %v1656
          %1849 = vmatprep.subr.mxu0 0.0
          %1850 = vmatpush2.msra.mxu0 %v1655
          %1851 = vmatprep.subr.mxu0 0.0
          %1852 = vmatpush2.msra.mxu0 %v1654
          %1853 = vmatprep.subr.mxu0 0.0
          %1854 = vmatpush2.msra.mxu0 %v1653
          %1855 = vmatprep.subr.mxu0 0.0
          %1856 = vmatpush2.msra.mxu0 %v1652
          %1857 = vmatprep.subr.mxu0 0.0
          %1858 = vmatpush2.msra.mxu0 %v1651
          %1859 = vmatprep.subr.mxu0 0.0
          %1860 = vmatpush2.msra.mxu0 %v1650
          %1861 = vmatprep.subr.mxu0 0.0
          %1862 = vmatpush2.msra.mxu0 %v1649
          %1863 = vmatprep.mubr.f32.mxu0 %v1714
          %1864 = vmatmul.mubr.f32.gmra.mxu0 %v1710
          %v1865 = vpop.f32.mrf.mxu0
          %v1866 = vadd.f32 %v1796, %v1865
          %v1867 = vpop.f32.mrf.mxu0
          %1868 = vdwg.mxu0
          %1869 = vmatprep.subr.mxu0 0.0
          %1870 = vmatpush1.msra.mxu0 %v1680
          %1871 = vmatprep.subr.mxu0 0.0
          %1872 = vmatpush1.msra.mxu0 %v1679
          %1873 = vmatprep.subr.mxu0 0.0
          %1874 = vmatpush1.msra.mxu0 %v1678
          %1875 = vmatprep.subr.mxu0 0.0
          %1876 = vmatpush1.msra.mxu0 %v1677
          %1877 = vmatprep.subr.mxu0 0.0
          %1878 = vmatpush1.msra.mxu0 %v1676
          %1879 = vmatprep.subr.mxu0 0.0
          %1880 = vmatpush1.msra.mxu0 %v1675
          %1881 = vmatprep.subr.mxu0 0.0
          %1882 = vmatpush1.msra.mxu0 %v1674
          %1883 = vmatprep.subr.mxu0 0.0
          %1884 = vmatpush1.msra.mxu0 %v1673
          %1885 = vmatprep.subr.mxu0 0.0
          %1886 = vmatpush1.msra.mxu0 %v1672
          %1887 = vmatprep.subr.mxu0 0.0
          %1888 = vmatpush1.msra.mxu0 %v1671
          %1889 = vmatprep.subr.mxu0 0.0
          %1890 = vmatpush1.msra.mxu0 %v1670
          %1891 = vmatprep.subr.mxu0 0.0
          %1892 = vmatpush1.msra.mxu0 %v1669
          %1893 = vmatprep.subr.mxu0 0.0
          %1894 = vmatpush1.msra.mxu0 %v1668
          %1895 = vmatprep.subr.mxu0 0.0
          %1896 = vmatpush1.msra.mxu0 %v1667
          %1897 = vmatprep.subr.mxu0 0.0
          %1898 = vmatpush1.msra.mxu0 %v1666
          %1899 = vmatprep.subr.mxu0 0.0
          %1900 = vmatpush1.msra.mxu0 %v1665
          %1901 = vmatprep.subr.mxu0 0.0
          %1902 = vmatpush2.msra.mxu0 %v1696
          %1903 = vmatprep.subr.mxu0 0.0
          %1904 = vmatpush2.msra.mxu0 %v1695
          %1905 = vmatprep.subr.mxu0 0.0
          %1906 = vmatpush2.msra.mxu0 %v1694
          %1907 = vmatprep.subr.mxu0 0.0
          %1908 = vmatpush2.msra.mxu0 %v1693
          %1909 = vmatprep.subr.mxu0 0.0
          %1910 = vmatpush2.msra.mxu0 %v1692
          %1911 = vmatprep.subr.mxu0 0.0
          %1912 = vmatpush2.msra.mxu0 %v1691
          %1913 = vmatprep.subr.mxu0 0.0
          %1914 = vmatpush2.msra.mxu0 %v1690
          %1915 = vmatprep.subr.mxu0 0.0
          %1916 = vmatpush2.msra.mxu0 %v1689
          %1917 = vmatprep.subr.mxu0 0.0
          %1918 = vmatpush2.msra.mxu0 %v1688
          %1919 = vmatprep.subr.mxu0 0.0
          %1920 = vmatpush2.msra.mxu0 %v1687
          %1921 = vmatprep.subr.mxu0 0.0
          %1922 = vmatpush2.msra.mxu0 %v1686
          %1923 = vmatprep.subr.mxu0 0.0
          %1924 = vmatpush2.msra.mxu0 %v1685
          %1925 = vmatprep.subr.mxu0 0.0
          %1926 = vmatpush2.msra.mxu0 %v1684
          %1927 = vmatprep.subr.mxu0 0.0
          %1928 = vmatpush2.msra.mxu0 %v1683
          %1929 = vmatprep.subr.mxu0 0.0
          %1930 = vmatpush2.msra.mxu0 %v1682
          %1931 = vmatprep.subr.mxu0 0.0
          %1932 = vmatpush2.msra.mxu0 %v1681
          %1933 = vmatprep.mubr.f32.mxu0 %v1722
          %1934 = vmatmul.mubr.f32.gmra.mxu0 %v1718
          %v1935 = vpop.f32.mrf.mxu0
          %v1936 = vadd.f32 %v1866, %v1935
          %v1937 = vpop.f32.mrf.mxu0
          %1938 = vdwg.mxu0
          %1939 = vst [vmem:[%s272] sm:$0x1] %v1936
        $region48: #{aves_classifier_forward.1} parent=39 // pred_fallthru
          _
        %p1940 = scmp.lt.s32.totalorder %s25, 1
        %s1941 = scalar_select %p1940, %s25, 1
        %s1942 = smul.addr %s1941, 6
        %s1943 = scalar_lea.vmem %s5, %s1942
        %s1944 = sand.u32 %s179, 1
        %s1945 = scalar_lea.sflag [#allocation3], %s1944
        %s1946 = sand.u32 %s179, 1
        %s1947 = scalar_lea.vmem [#allocation2], %s1946
        // Predicated region
        $region49: #{aves_classifier_forward.1} parent=39 // pred_check
          %p1948 = pneg %p163
        $region50: #{aves_classifier_forward.1} parent=39 // pred_check_branch
          %1950 = sbr.rel (%p1948) target = $region52
        $region51: #{aves_classifier_forward.1} parent=39 // pred_region
          _
        $region52: #{aves_classifier_forward.1} parent=39 // pred_fallthru
          _
        // Predicated region
        $region53: #{aves_classifier_forward.1} parent=39 // pred_check
          %p1951 = pneg %p189
        $region54: #{aves_classifier_forward.1} parent=39 // pred_check_branch
          %1953 = sbr.rel (%p1951) target = $region56
        $region55: #{aves_classifier_forward.1} parent=39 // pred_region
          %s1955 = ssub.s32 16, 16
          %1956 = vsyncadd %s1945, %s1955
          %s1957 = smul.addr %s25, 16
          %s1958 = scalar_lea.hbm %s6, %s1957
          %s1960 = sshll.u32 %s1947, 4
          %s1961 = int_to_ptr.vmem [resolvable:$true] %s1960
          %1963 = dma.vmem_to_hbm [thread:$0]  %s1961, 16, %s1958, %s1945
        $region56: #{aves_classifier_forward.1} parent=39 // pred_fallthru
          _
      $region40: #{aves_classifier_forward.1} parent=5 // pred_fallthru
        _
      %p1964 = scmp.le.s32.totalorder 2, %s16
      // Predicated region
      $region57: #{aves_classifier_forward.1} parent=5 // pred_check
        %p1965 = pneg %p1964
      $region58: #{aves_classifier_forward.1} parent=5 // pred_check_branch
        %1967 = sbr.rel (%p1965) target = $region60
      $region59: #{aves_classifier_forward.1} parent=5 // pred_region
        %s1968 = ssub.s32 %s16, 2
        // Predicated region
        $region61: #{aves_classifier_forward.1} parent=59 // pred_check
          %p1969 = pneg %p169
        $region62: #{aves_classifier_forward.1} parent=59 // pred_check_branch
          %1971 = sbr.rel (%p1969) target = $region64
        $region63: #{aves_classifier_forward.1} parent=59 // pred_region
          %p1972 = scmp.lt.s32.totalorder %s27, 1
          %s1973 = scalar_select %p1972, %s27, 1
          %s1974 = smul.addr %s1973, 6
          %s1975 = scalar_lea.vmem %s5, %s1974
        $region64: #{aves_classifier_forward.1} parent=59 // pred_fallthru
          _
        // Predicated region
        $region65: #{aves_classifier_forward.1} parent=59 // pred_check
          %p1976 = pneg %p195
        $region66: #{aves_classifier_forward.1} parent=59 // pred_check_branch
          %1978 = sbr.rel (%p1976) target = $region68
        $region67: #{aves_classifier_forward.1} parent=59 // pred_region
          %s1979 = sand.u32 %s180, 1
          %s1980 = scalar_lea.sflag [#allocation3], %s1979
          %s1981 = sand.u32 %s180, 1
          %s1982 = scalar_lea.vmem [#allocation2], %s1981
          %1983 = dma.done %s1980, 16
        $region68: #{aves_classifier_forward.1} parent=59 // pred_fallthru
          _
      $region60: #{aves_classifier_forward.1} parent=5 // pred_fallthru
        _
    $region6: #{aves_classifier_forward.1} parent=1 // loop_footer
      %s20 = sadd.s32 1, %s16
    $region7: #{aves_classifier_forward.1} parent=1 // loop_footer_branch
      %15 = sbr.rel target = $region3
    $region8: #{aves_classifier_forward.1} parent=1 // loop_exit
      _
    %1984 = vsyncpa [#allocation3], 1
    %s1985 = scalar_lea.sflag [#allocation3], 1
    %1986 = vsyncpa %s1985, 1

</llo_original>
